<compile_context>
chip_gen: v7x
topology: tpu7x:2x2x1
jax: 0.10.0
libtpu: 0.0.40
codegen_flags: <defaults>
</compile_context>

<pallas_src>
import jax
import jax.numpy as jnp
from jax import lax
from jax.experimental import pallas as pl
from jax.experimental.pallas import tpu as pltpu

# Model hyper-parameters (small, consistent with the reference module)
VOCAB_SIZE = 16     # vocab_size
EMBEDDING_DIM = 16  # embedding_dim
N_HIDDEN = 32       # n_hidden
NUM_CLASSES = 2     # num_classes
BATCH = 2
SEQ_LEN = 8


def _bilstm_attention_kernel(gin_ref, whh_ref, wout_ref, bout_ref,
                             logits_ref, attn_ref):
    # gin_ref : (T, B, 8H) precomputed gate inputs (input proj + bias), permuted
    #           layout [i_f,i_b | f_f,f_b | o_f,o_b | g_f,g_b]; the bwd half of
    #           step t already corresponds to token x[T-1-t].
    # whh_ref : (2H, 8H) block-structured recurrent weights in the same layout.
    # wout_ref: (2H, C) final linear weight (pre-transposed); bout_ref: (1, C).
    # logits_ref: (B, C)   attn_ref: (B, T)
    T, B, G8 = gin_ref.shape
    H2 = G8 // 4          # 2H (both directions)
    H = H2 // 2
    S = 3 * H2            # 6H: width of the sigmoid (i|f|o) region

    # Hoist the recurrent weights into vregs once (16 vregs), outside the loop.
    w_rec = whh_ref[...]                                   # (2H, 8H)

    h = jnp.zeros((B, H2), jnp.float32)                    # [h_fwd | h_bwd]
    c = jnp.zeros((B, H2), jnp.float32)                    # [c_fwd | c_bwd]
    hs = []                                                # register history

    # Fully-unrolled fused fwd+bwd recurrence (T = 8 is static).  One
    # (B,2H)x(2H,8H) MXU push per step against the block-diagonal weights.
    # (v5e note: two per-direction (B,H)x(H,4H) pushes map 1:1 onto its
    #  128-wide MXU; the single 256-wide push is kept for v6e/v7x.)
    for t in range(T):
        g = gin_ref[t] + jnp.dot(h, w_rec,
                                 preferred_element_type=jnp.float32)   # (B, 8H)
        # sigmoid via EUP tanh (no divide); only over the 6H sigmoid region.
        sig = 0.5 * (jnp.tanh(0.5 * g[:, 0:S]) + 1.0)      # [i | f | o], (B, 6H)
        g_gate = jnp.tanh(g[:, S:G8])                      # [g_f | g_b], (B, 2H)
        i_gate = sig[:, 0:H2]
        f_gate = sig[:, H2:2 * H2]
        o_gate = sig[:, 2 * H2:3 * H2]
        c = f_gate * c + i_gate * g_gate                   # both directions at once
        h = o_gate * jnp.tanh(c)
        hs.append(h)

    # ---- Attention + output head (all off the serial chain). ----
    # PyTorch final_hidden_state.view(-1, 2H, 1) quirk: reinterpret the
    # (2, B, H) final state as (B, 2H) in memory order.
    hidden = jnp.stack([h[:, 0:H], h[:, H:H2]], axis=0).reshape(B, H2)  # (B, 2H)

    # scores[b, t] = <h_fwd(t)[b], hidden[b, :H]> + <h_bwd@time t [b], hidden[b, H:]>
    # where h_bwd at time t is hs[T-1-t][:, H:2H] (backward step re-alignment).
    score_cols = []
    for t in range(T):
        pf = jnp.sum(hs[t][:, 0:H] * hidden[:, 0:H], axis=1, keepdims=True)
        pb = jnp.sum(hs[T - 1 - t][:, H:H2] * hidden[:, H:H2], axis=1, keepdims=True)
        score_cols.append(pf + pb)
    scores = jnp.concatenate(score_cols, axis=1)           # (B, T)

    # Numerically-stable softmax over T (exact divide; see header note).
    m = jnp.max(scores, axis=1, keepdims=True)
    e = jnp.exp(scores - m)
    soft = e / jnp.sum(e, axis=1, keepdims=True)           # (B, T)

    # context[b] = sum_t soft[b, t] * lstm_out[b, t, :]
    ctx_f = jnp.zeros((B, H), jnp.float32)
    ctx_b = jnp.zeros((B, H), jnp.float32)
    for t in range(T):
        ctx_f = ctx_f + soft[:, t:t + 1] * hs[t][:, 0:H]
        # hs[t][:, H:2H] is the backward state for time T-1-t.
        ctx_b = ctx_b + soft[:, T - 1 - t:T - t] * hs[t][:, H:H2]
    context = jnp.concatenate([ctx_f, ctx_b], axis=1)      # (B, 2H)

    logits_ref[...] = (jnp.dot(context, wout_ref[...],
                               preferred_element_type=jnp.float32)
                       + bout_ref[...])
    attn_ref[...] = soft


def prepare_params(raw):
    """One-time weight preparation: fold the embedding, input projection and
    biases into per-direction gate tables and build the permuted / block-
    structured recurrent weights, so the per-call path is just two 16-row
    gathers + the kernel."""
    H = N_HIDDEN
    emb = raw["embedding"].astype(jnp.float32)              # (V, E)
    w_ih = raw["w_ih"].astype(jnp.float32)                  # (2, 4H, E)
    w_hh = raw["w_hh"].astype(jnp.float32)                  # (2, 4H, H)
    bias = (raw["b_ih"] + raw["b_hh"]).astype(jnp.float32)  # (2, 4H)

    def scatter_gates(src, d):
        # src: (K, 4H) with PyTorch column order [i, f, g, o].
        # Place into the permuted layout [i_f,i_b | f_f,f_b | o_f,o_b | g_f,g_b]
        # (d = 0 forward, d = 1 backward); other direction's columns stay 0.
        K = src.shape[0]
        dst = jnp.zeros((K, 8 * H), jnp.float32)
        # permuted slot -> source gate block:  i<-0, f<-1, o<-3, g<-2
        for slot, blk in enumerate((0, 1, 3, 2)):
            dst = dst.at[:, (2 * slot + d) * H:(2 * slot + d + 1) * H].set(
                src[:, blk * H:(blk + 1) * H])
        return dst

    # Gate tables: token -> input-projection pre-activations (+ fused biases).
    proj_f = emb @ w_ih[0].T + bias[0]                       # (V, 4H)
    proj_b = emb @ w_ih[1].T + bias[1]                       # (V, 4H)
    table_f = scatter_gates(proj_f, 0)                       # (V, 8H) fwd columns
    table_b = scatter_gates(proj_b, 1)                       # (V, 8H) bwd columns

    # Block-structured recurrent weights in the same permuted layout.
    whh_blk = jnp.zeros((2 * H, 8 * H), jnp.float32)
    whh_blk = whh_blk.at[0:H, :].set(scatter_gates(w_hh[0].T, 0))
    whh_blk = whh_blk.at[H:2 * H, :].set(scatter_gates(w_hh[1].T, 1))

    return {
        "table_f": table_f,
        "table_b": table_b,
        "whh_blk": whh_blk,
        "wout_t": raw["w_out"].T.astype(jnp.float32),        # (2H, C)
        "bout": raw["b_out"].reshape(1, -1).astype(jnp.float32),  # (1, C)
    }


@jax.jit
def bilstm_attention_forward(X, prepared):
    """X: (B, T) int32 token ids. Returns (logits (B, C), attention (B, T))."""
    B, T = X.shape
    H = N_HIDDEN
    # Gather the prepare-time gate table; fwd uses x[t], bwd uses x[T-1-t].
    # Each table holds only its own direction's columns (zeros elsewhere), so
    # the sum yields the full (T, B, 8H) permuted gate-input tensor.
    gin = prepared["table_f"][X.T] + prepared["table_b"][X[:, ::-1].T]

    vmem = pl.BlockSpec(memory_space=pltpu.MemorySpace.VMEM)
    logits, attn = pl.pallas_call(
        _bilstm_attention_kernel,
        out_shape=(jax.ShapeDtypeStruct((B, NUM_CLASSES), jnp.float32),
                   jax.ShapeDtypeStruct((B, T), jnp.float32)),
        in_specs=[vmem] * 4,
        out_specs=(vmem, vmem),
    )(gin, prepared["whh_blk"], prepared["wout_t"], prepared["bout"])
    return logits, attn


def reference_forward(X, params):
    """Pure-JAX reference mirroring the PyTorch forward semantics."""
    H = N_HIDDEN
    emb = params["embedding"][X].astype(jnp.float32)       # (B, T, E)
    emb = jnp.transpose(emb, (1, 0, 2))                    # (T, B, E)
    T, B, _E = emb.shape
    wih_t = jnp.transpose(params["w_ih"], (0, 2, 1))
    whh_t = jnp.transpose(params["w_hh"], (0, 2, 1))
    bias = params["b_ih"] + params["b_hh"]                 # (2, 4H)

    def run(d, xs):
        def step(carry, x):
            h, c = carry
            gates = x @ wih_t[d] + h @ whh_t[d] + bias[d]
            i = jax.nn.sigmoid(gates[:, :H])
            f = jax.nn.sigmoid(gates[:, H:2 * H])
            g = jnp.tanh(gates[:, 2 * H:3 * H])
            o = jax.nn.sigmoid(gates[:, 3 * H:])
            c = f * c + i * g
            h = o * jnp.tanh(c)
            return (h, c), h
        init = (jnp.zeros((B, H), jnp.float32), jnp.zeros((B, H), jnp.float32))
        (h_T, _), outs = lax.scan(step, init, xs)
        return h_T, outs

    h_f, out_f = run(0, emb)
    h_b, out_b_rev = run(1, emb[::-1])
    out_b = out_b_rev[::-1]
    lstm_out = jnp.concatenate([out_f, out_b], axis=-1)        # (T, B, 2H)
    final_state = jnp.stack([h_f, h_b], axis=0)                # (2, B, H)
    hidden = final_state.reshape(B, 2 * H)                     # PyTorch .view quirk
    scores = jnp.einsum('tbk,bk->bt', lstm_out, hidden)        # (B, T)
    soft = jax.nn.softmax(scores, axis=1)
    context = jnp.einsum('tbk,bt->bk', lstm_out, soft)         # (B, 2H)
    logits = context @ params["w_out"].T + params["b_out"]
    return logits, soft


if __name__ == "__main__":
    H = N_HIDDEN
    key = jax.random.PRNGKey(0)
    ks = jax.random.split(key, 8)
    bound = 1.0 / (float(H) ** 0.5)

    params = {
        "embedding": jax.random.normal(ks[0], (VOCAB_SIZE, EMBEDDING_DIM), jnp.float32),
        "w_ih": jax.random.uniform(ks[1], (2, 4 * H, EMBEDDING_DIM), jnp.float32, -bound, bound),
        "w_hh": jax.random.uniform(ks[2], (2, 4 * H, H), jnp.float32, -bound, bound),
        "b_ih": jax.random.uniform(ks[3], (2, 4 * H), jnp.float32, -bound, bound),
        "b_hh": jax.random.uniform(ks[4], (2, 4 * H), jnp.float32, -bound, bound),
        "w_out": jax.random.uniform(ks[5], (NUM_CLASSES, 2 * H), jnp.float32, -bound, bound),
        "b_out": jax.random.uniform(ks[6], (NUM_CLASSES,), jnp.float32, -bound, bound),
    }
    X = jax.random.randint(ks[7], (BATCH, SEQ_LEN), 0, VOCAB_SIZE, dtype=jnp.int32)

    prepared = jax.block_until_ready(prepare_params(params))   # one-time weight prep

    logits, attention = bilstm_attention_forward(X, prepared)
    logits, attention = jax.block_until_ready((logits, attention))

    ref_logits, ref_attention = reference_forward(X, params)
    assert logits.shape == (BATCH, NUM_CLASSES)
    assert attention.shape == (BATCH, SEQ_LEN)
    assert jnp.allclose(logits, ref_logits, atol=1e-4, rtol=1e-4)
    assert jnp.allclose(attention, ref_attention, atol=1e-4, rtol=1e-4)

    print("KERNEL_OK")
</pallas_src>

<mosaic_0001>
module attributes {stable_mosaic.version = 11 : i64} {
  func.func @_bilstm_attention_kernel(%arg0: memref<8x2x256xf32, #tpu.memory_space<vmem>>, %arg1: memref<64x256xf32, #tpu.memory_space<vmem>>, %arg2: memref<64x2xf32, #tpu.memory_space<vmem>>, %arg3: memref<1x2xf32, #tpu.memory_space<vmem>>, %arg4: memref<2x2xf32, #tpu.memory_space<vmem>>, %arg5: memref<2x8xf32, #tpu.memory_space<vmem>>) attributes {dimension_semantics = [], scalar_prefetch = 0 : i64, scratch_operands = 0 : i64, tpu.core_type = #tpu.core_type<tc>} {
    %c0 = arith.constant 0 : index
    %c0_0 = arith.constant 0 : index
    %0 = vector.load %arg1[%c0, %c0_0] : memref<64x256xf32, #tpu.memory_space<vmem>>, vector<64x256xf32>
    %cst = arith.constant 0.000000e+00 : f32
    %1 = vector.broadcast %cst : f32 to vector<2x64xf32>
    %cst_1 = arith.constant 0.000000e+00 : f32
    %2 = vector.broadcast %cst_1 : f32 to vector<2x64xf32>
    %c0_2 = arith.constant 0 : index
    %c0_3 = arith.constant 0 : index
    %c0_4 = arith.constant 0 : index
    %3 = vector.load %arg0[%c0_2, %c0_3, %c0_4] : memref<8x2x256xf32, #tpu.memory_space<vmem>>, vector<1x2x256xf32>
    %4 = vector.shape_cast %3 : vector<1x2x256xf32> to vector<2x256xf32>
    %cst_5 = arith.constant dense<0.000000e+00> : vector<2x256xf32>
    %5 = tpu.matmul %1, %0, %cst_5 {dimension_numbers = #tpu.dot_dimension_numbers<[1], [0], [0], [1], [0, 0, 1, 1], [], []>} : vector<2x64xf32>, vector<64x256xf32>, vector<2x256xf32> -> vector<2x256xf32>
    %6 = arith.addf %4, %5 : vector<2x256xf32>
    %7 = vector.extract_strided_slice %6 {offsets = [0, 0], sizes = [2, 192], strides = [1, 1]} : vector<2x256xf32> to vector<2x192xf32>
    %cst_6 = arith.constant 5.000000e-01 : f32
    %8 = vector.broadcast %cst_6 : f32 to vector<2x192xf32>
    %9 = arith.mulf %8, %7 : vector<2x192xf32>
    %10 = math.tanh %9 : vector<2x192xf32>
    %cst_7 = arith.constant 1.000000e+00 : f32
    %11 = vector.broadcast %cst_7 : f32 to vector<2x192xf32>
    %12 = arith.addf %10, %11 : vector<2x192xf32>
    %cst_8 = arith.constant 5.000000e-01 : f32
    %13 = vector.broadcast %cst_8 : f32 to vector<2x192xf32>
    %14 = arith.mulf %13, %12 : vector<2x192xf32>
    %15 = vector.extract_strided_slice %6 {offsets = [0, 192], sizes = [2, 64], strides = [1, 1]} : vector<2x256xf32> to vector<2x64xf32>
    %16 = math.tanh %15 : vector<2x64xf32>
    %17 = vector.extract_strided_slice %14 {offsets = [0, 0], sizes = [2, 64], strides = [1, 1]} : vector<2x192xf32> to vector<2x64xf32>
    %18 = vector.extract_strided_slice %14 {offsets = [0, 64], sizes = [2, 64], strides = [1, 1]} : vector<2x192xf32> to vector<2x64xf32>
    %19 = vector.extract_strided_slice %14 {offsets = [0, 128], sizes = [2, 64], strides = [1, 1]} : vector<2x192xf32> to vector<2x64xf32>
    %20 = arith.mulf %18, %2 : vector<2x64xf32>
    %21 = arith.mulf %17, %16 : vector<2x64xf32>
    %22 = arith.addf %20, %21 : vector<2x64xf32>
    %23 = math.tanh %22 : vector<2x64xf32>
    %24 = arith.mulf %19, %23 : vector<2x64xf32>
    %c1 = arith.constant 1 : index
    %c0_9 = arith.constant 0 : index
    %c0_10 = arith.constant 0 : index
    %25 = vector.load %arg0[%c1, %c0_9, %c0_10] : memref<8x2x256xf32, #tpu.memory_space<vmem>>, vector<1x2x256xf32>
    %26 = vector.shape_cast %25 : vector<1x2x256xf32> to vector<2x256xf32>
    %cst_11 = arith.constant dense<0.000000e+00> : vector<2x256xf32>
    %27 = tpu.matmul %24, %0, %cst_11 {dimension_numbers = #tpu.dot_dimension_numbers<[1], [0], [0], [1], [0, 0, 1, 1], [], []>} : vector<2x64xf32>, vector<64x256xf32>, vector<2x256xf32> -> vector<2x256xf32>
    %28 = arith.addf %26, %27 : vector<2x256xf32>
    %29 = vector.extract_strided_slice %28 {offsets = [0, 0], sizes = [2, 192], strides = [1, 1]} : vector<2x256xf32> to vector<2x192xf32>
    %cst_12 = arith.constant 5.000000e-01 : f32
    %30 = vector.broadcast %cst_12 : f32 to vector<2x192xf32>
    %31 = arith.mulf %30, %29 : vector<2x192xf32>
    %32 = math.tanh %31 : vector<2x192xf32>
    %cst_13 = arith.constant 1.000000e+00 : f32
    %33 = vector.broadcast %cst_13 : f32 to vector<2x192xf32>
    %34 = arith.addf %32, %33 : vector<2x192xf32>
    %cst_14 = arith.constant 5.000000e-01 : f32
    %35 = vector.broadcast %cst_14 : f32 to vector<2x192xf32>
    %36 = arith.mulf %35, %34 : vector<2x192xf32>
    %37 = vector.extract_strided_slice %28 {offsets = [0, 192], sizes = [2, 64], strides = [1, 1]} : vector<2x256xf32> to vector<2x64xf32>
    %38 = math.tanh %37 : vector<2x64xf32>
    %39 = vector.extract_strided_slice %36 {offsets = [0, 0], sizes = [2, 64], strides = [1, 1]} : vector<2x192xf32> to vector<2x64xf32>
    %40 = vector.extract_strided_slice %36 {offsets = [0, 64], sizes = [2, 64], strides = [1, 1]} : vector<2x192xf32> to vector<2x64xf32>
    %41 = vector.extract_strided_slice %36 {offsets = [0, 128], sizes = [2, 64], strides = [1, 1]} : vector<2x192xf32> to vector<2x64xf32>
    %42 = arith.mulf %40, %22 : vector<2x64xf32>
    %43 = arith.mulf %39, %38 : vector<2x64xf32>
    %44 = arith.addf %42, %43 : vector<2x64xf32>
    %45 = math.tanh %44 : vector<2x64xf32>
    %46 = arith.mulf %41, %45 : vector<2x64xf32>
    %c2 = arith.constant 2 : index
    %c0_15 = arith.constant 0 : index
    %c0_16 = arith.constant 0 : index
    %47 = vector.load %arg0[%c2, %c0_15, %c0_16] : memref<8x2x256xf32, #tpu.memory_space<vmem>>, vector<1x2x256xf32>
    %48 = vector.shape_cast %47 : vector<1x2x256xf32> to vector<2x256xf32>
    %cst_17 = arith.constant dense<0.000000e+00> : vector<2x256xf32>
    %49 = tpu.matmul %46, %0, %cst_17 {dimension_numbers = #tpu.dot_dimension_numbers<[1], [0], [0], [1], [0, 0, 1, 1], [], []>} : vector<2x64xf32>, vector<64x256xf32>, vector<2x256xf32> -> vector<2x256xf32>
    %50 = arith.addf %48, %49 : vector<2x256xf32>
    %51 = vector.extract_strided_slice %50 {offsets = [0, 0], sizes = [2, 192], strides = [1, 1]} : vector<2x256xf32> to vector<2x192xf32>
    %cst_18 = arith.constant 5.000000e-01 : f32
    %52 = vector.broadcast %cst_18 : f32 to vector<2x192xf32>
    %53 = arith.mulf %52, %51 : vector<2x192xf32>
    %54 = math.tanh %53 : vector<2x192xf32>
    %cst_19 = arith.constant 1.000000e+00 : f32
    %55 = vector.broadcast %cst_19 : f32 to vector<2x192xf32>
    %56 = arith.addf %54, %55 : vector<2x192xf32>
    %cst_20 = arith.constant 5.000000e-01 : f32
    %57 = vector.broadcast %cst_20 : f32 to vector<2x192xf32>
    %58 = arith.mulf %57, %56 : vector<2x192xf32>
    %59 = vector.extract_strided_slice %50 {offsets = [0, 192], sizes = [2, 64], strides = [1, 1]} : vector<2x256xf32> to vector<2x64xf32>
    %60 = math.tanh %59 : vector<2x64xf32>
    %61 = vector.extract_strided_slice %58 {offsets = [0, 0], sizes = [2, 64], strides = [1, 1]} : vector<2x192xf32> to vector<2x64xf32>
    %62 = vector.extract_strided_slice %58 {offsets = [0, 64], sizes = [2, 64], strides = [1, 1]} : vector<2x192xf32> to vector<2x64xf32>
    %63 = vector.extract_strided_slice %58 {offsets = [0, 128], sizes = [2, 64], strides = [1, 1]} : vector<2x192xf32> to vector<2x64xf32>
    %64 = arith.mulf %62, %44 : vector<2x64xf32>
    %65 = arith.mulf %61, %60 : vector<2x64xf32>
    %66 = arith.addf %64, %65 : vector<2x64xf32>
    %67 = math.tanh %66 : vector<2x64xf32>
    %68 = arith.mulf %63, %67 : vector<2x64xf32>
    %c3 = arith.constant 3 : index
    %c0_21 = arith.constant 0 : index
    %c0_22 = arith.constant 0 : index
    %69 = vector.load %arg0[%c3, %c0_21, %c0_22] : memref<8x2x256xf32, #tpu.memory_space<vmem>>, vector<1x2x256xf32>
    %70 = vector.shape_cast %69 : vector<1x2x256xf32> to vector<2x256xf32>
    %cst_23 = arith.constant dense<0.000000e+00> : vector<2x256xf32>
    %71 = tpu.matmul %68, %0, %cst_23 {dimension_numbers = #tpu.dot_dimension_numbers<[1], [0], [0], [1], [0, 0, 1, 1], [], []>} : vector<2x64xf32>, vector<64x256xf32>, vector<2x256xf32> -> vector<2x256xf32>
    %72 = arith.addf %70, %71 : vector<2x256xf32>
    %73 = vector.extract_strided_slice %72 {offsets = [0, 0], sizes = [2, 192], strides = [1, 1]} : vector<2x256xf32> to vector<2x192xf32>
    %cst_24 = arith.constant 5.000000e-01 : f32
    %74 = vector.broadcast %cst_24 : f32 to vector<2x192xf32>
    %75 = arith.mulf %74, %73 : vector<2x192xf32>
    %76 = math.tanh %75 : vector<2x192xf32>
    %cst_25 = arith.constant 1.000000e+00 : f32
    %77 = vector.broadcast %cst_25 : f32 to vector<2x192xf32>
    %78 = arith.addf %76, %77 : vector<2x192xf32>
    %cst_26 = arith.constant 5.000000e-01 : f32
    %79 = vector.broadcast %cst_26 : f32 to vector<2x192xf32>
    %80 = arith.mulf %79, %78 : vector<2x192xf32>
    %81 = vector.extract_strided_slice %72 {offsets = [0, 192], sizes = [2, 64], strides = [1, 1]} : vector<2x256xf32> to vector<2x64xf32>
    %82 = math.tanh %81 : vector<2x64xf32>
    %83 = vector.extract_strided_slice %80 {offsets = [0, 0], sizes = [2, 64], strides = [1, 1]} : vector<2x192xf32> to vector<2x64xf32>
    %84 = vector.extract_strided_slice %80 {offsets = [0, 64], sizes = [2, 64], strides = [1, 1]} : vector<2x192xf32> to vector<2x64xf32>
    %85 = vector.extract_strided_slice %80 {offsets = [0, 128], sizes = [2, 64], strides = [1, 1]} : vector<2x192xf32> to vector<2x64xf32>
    %86 = arith.mulf %84, %66 : vector<2x64xf32>
    %87 = arith.mulf %83, %82 : vector<2x64xf32>
    %88 = arith.addf %86, %87 : vector<2x64xf32>
    %89 = math.tanh %88 : vector<2x64xf32>
    %90 = arith.mulf %85, %89 : vector<2x64xf32>
    %c4 = arith.constant 4 : index
    %c0_27 = arith.constant 0 : index
    %c0_28 = arith.constant 0 : index
    %91 = vector.load %arg0[%c4, %c0_27, %c0_28] : memref<8x2x256xf32, #tpu.memory_space<vmem>>, vector<1x2x256xf32>
    %92 = vector.shape_cast %91 : vector<1x2x256xf32> to vector<2x256xf32>
    %cst_29 = arith.constant dense<0.000000e+00> : vector<2x256xf32>
    %93 = tpu.matmul %90, %0, %cst_29 {dimension_numbers = #tpu.dot_dimension_numbers<[1], [0], [0], [1], [0, 0, 1, 1], [], []>} : vector<2x64xf32>, vector<64x256xf32>, vector<2x256xf32> -> vector<2x256xf32>
    %94 = arith.addf %92, %93 : vector<2x256xf32>
    %95 = vector.extract_strided_slice %94 {offsets = [0, 0], sizes = [2, 192], strides = [1, 1]} : vector<2x256xf32> to vector<2x192xf32>
    %cst_30 = arith.constant 5.000000e-01 : f32
    %96 = vector.broadcast %cst_30 : f32 to vector<2x192xf32>
    %97 = arith.mulf %96, %95 : vector<2x192xf32>
    %98 = math.tanh %97 : vector<2x192xf32>
    %cst_31 = arith.constant 1.000000e+00 : f32
    %99 = vector.broadcast %cst_31 : f32 to vector<2x192xf32>
    %100 = arith.addf %98, %99 : vector<2x192xf32>
    %cst_32 = arith.constant 5.000000e-01 : f32
    %101 = vector.broadcast %cst_32 : f32 to vector<2x192xf32>
    %102 = arith.mulf %101, %100 : vector<2x192xf32>
    %103 = vector.extract_strided_slice %94 {offsets = [0, 192], sizes = [2, 64], strides = [1, 1]} : vector<2x256xf32> to vector<2x64xf32>
    %104 = math.tanh %103 : vector<2x64xf32>
    %105 = vector.extract_strided_slice %102 {offsets = [0, 0], sizes = [2, 64], strides = [1, 1]} : vector<2x192xf32> to vector<2x64xf32>
    %106 = vector.extract_strided_slice %102 {offsets = [0, 64], sizes = [2, 64], strides = [1, 1]} : vector<2x192xf32> to vector<2x64xf32>
    %107 = vector.extract_strided_slice %102 {offsets = [0, 128], sizes = [2, 64], strides = [1, 1]} : vector<2x192xf32> to vector<2x64xf32>
    %108 = arith.mulf %106, %88 : vector<2x64xf32>
    %109 = arith.mulf %105, %104 : vector<2x64xf32>
    %110 = arith.addf %108, %109 : vector<2x64xf32>
    %111 = math.tanh %110 : vector<2x64xf32>
    %112 = arith.mulf %107, %111 : vector<2x64xf32>
    %c5 = arith.constant 5 : index
    %c0_33 = arith.constant 0 : index
    %c0_34 = arith.constant 0 : index
    %113 = vector.load %arg0[%c5, %c0_33, %c0_34] : memref<8x2x256xf32, #tpu.memory_space<vmem>>, vector<1x2x256xf32>
    %114 = vector.shape_cast %113 : vector<1x2x256xf32> to vector<2x256xf32>
    %cst_35 = arith.constant dense<0.000000e+00> : vector<2x256xf32>
    %115 = tpu.matmul %112, %0, %cst_35 {dimension_numbers = #tpu.dot_dimension_numbers<[1], [0], [0], [1], [0, 0, 1, 1], [], []>} : vector<2x64xf32>, vector<64x256xf32>, vector<2x256xf32> -> vector<2x256xf32>
    %116 = arith.addf %114, %115 : vector<2x256xf32>
    %117 = vector.extract_strided_slice %116 {offsets = [0, 0], sizes = [2, 192], strides = [1, 1]} : vector<2x256xf32> to vector<2x192xf32>
    %cst_36 = arith.constant 5.000000e-01 : f32
    %118 = vector.broadcast %cst_36 : f32 to vector<2x192xf32>
    %119 = arith.mulf %118, %117 : vector<2x192xf32>
    %120 = math.tanh %119 : vector<2x192xf32>
    %cst_37 = arith.constant 1.000000e+00 : f32
    %121 = vector.broadcast %cst_37 : f32 to vector<2x192xf32>
    %122 = arith.addf %120, %121 : vector<2x192xf32>
    %cst_38 = arith.constant 5.000000e-01 : f32
    %123 = vector.broadcast %cst_38 : f32 to vector<2x192xf32>
    %124 = arith.mulf %123, %122 : vector<2x192xf32>
    %125 = vector.extract_strided_slice %116 {offsets = [0, 192], sizes = [2, 64], strides = [1, 1]} : vector<2x256xf32> to vector<2x64xf32>
    %126 = math.tanh %125 : vector<2x64xf32>
    %127 = vector.extract_strided_slice %124 {offsets = [0, 0], sizes = [2, 64], strides = [1, 1]} : vector<2x192xf32> to vector<2x64xf32>
    %128 = vector.extract_strided_slice %124 {offsets = [0, 64], sizes = [2, 64], strides = [1, 1]} : vector<2x192xf32> to vector<2x64xf32>
    %129 = vector.extract_strided_slice %124 {offsets = [0, 128], sizes = [2, 64], strides = [1, 1]} : vector<2x192xf32> to vector<2x64xf32>
    %130 = arith.mulf %128, %110 : vector<2x64xf32>
    %131 = arith.mulf %127, %126 : vector<2x64xf32>
    %132 = arith.addf %130, %131 : vector<2x64xf32>
    %133 = math.tanh %132 : vector<2x64xf32>
    %134 = arith.mulf %129, %133 : vector<2x64xf32>
    %c6 = arith.constant 6 : index
    %c0_39 = arith.constant 0 : index
    %c0_40 = arith.constant 0 : index
    %135 = vector.load %arg0[%c6, %c0_39, %c0_40] : memref<8x2x256xf32, #tpu.memory_space<vmem>>, vector<1x2x256xf32>
    %136 = vector.shape_cast %135 : vector<1x2x256xf32> to vector<2x256xf32>
    %cst_41 = arith.constant dense<0.000000e+00> : vector<2x256xf32>
    %137 = tpu.matmul %134, %0, %cst_41 {dimension_numbers = #tpu.dot_dimension_numbers<[1], [0], [0], [1], [0, 0, 1, 1], [], []>} : vector<2x64xf32>, vector<64x256xf32>, vector<2x256xf32> -> vector<2x256xf32>
    %138 = arith.addf %136, %137 : vector<2x256xf32>
    %139 = vector.extract_strided_slice %138 {offsets = [0, 0], sizes = [2, 192], strides = [1, 1]} : vector<2x256xf32> to vector<2x192xf32>
    %cst_42 = arith.constant 5.000000e-01 : f32
    %140 = vector.broadcast %cst_42 : f32 to vector<2x192xf32>
    %141 = arith.mulf %140, %139 : vector<2x192xf32>
    %142 = math.tanh %141 : vector<2x192xf32>
    %cst_43 = arith.constant 1.000000e+00 : f32
    %143 = vector.broadcast %cst_43 : f32 to vector<2x192xf32>
    %144 = arith.addf %142, %143 : vector<2x192xf32>
    %cst_44 = arith.constant 5.000000e-01 : f32
    %145 = vector.broadcast %cst_44 : f32 to vector<2x192xf32>
    %146 = arith.mulf %145, %144 : vector<2x192xf32>
    %147 = vector.extract_strided_slice %138 {offsets = [0, 192], sizes = [2, 64], strides = [1, 1]} : vector<2x256xf32> to vector<2x64xf32>
    %148 = math.tanh %147 : vector<2x64xf32>
    %149 = vector.extract_strided_slice %146 {offsets = [0, 0], sizes = [2, 64], strides = [1, 1]} : vector<2x192xf32> to vector<2x64xf32>
    %150 = vector.extract_strided_slice %146 {offsets = [0, 64], sizes = [2, 64], strides = [1, 1]} : vector<2x192xf32> to vector<2x64xf32>
    %151 = vector.extract_strided_slice %146 {offsets = [0, 128], sizes = [2, 64], strides = [1, 1]} : vector<2x192xf32> to vector<2x64xf32>
    %152 = arith.mulf %150, %132 : vector<2x64xf32>
    %153 = arith.mulf %149, %148 : vector<2x64xf32>
    %154 = arith.addf %152, %153 : vector<2x64xf32>
    %155 = math.tanh %154 : vector<2x64xf32>
    %156 = arith.mulf %151, %155 : vector<2x64xf32>
    %c7 = arith.constant 7 : index
    %c0_45 = arith.constant 0 : index
    %c0_46 = arith.constant 0 : index
    %157 = vector.load %arg0[%c7, %c0_45, %c0_46] : memref<8x2x256xf32, #tpu.memory_space<vmem>>, vector<1x2x256xf32>
    %158 = vector.shape_cast %157 : vector<1x2x256xf32> to vector<2x256xf32>
    %cst_47 = arith.constant dense<0.000000e+00> : vector<2x256xf32>
    %159 = tpu.matmul %156, %0, %cst_47 {dimension_numbers = #tpu.dot_dimension_numbers<[1], [0], [0], [1], [0, 0, 1, 1], [], []>} : vector<2x64xf32>, vector<64x256xf32>, vector<2x256xf32> -> vector<2x256xf32>
    %160 = arith.addf %158, %159 : vector<2x256xf32>
    %161 = vector.extract_strided_slice %160 {offsets = [0, 0], sizes = [2, 192], strides = [1, 1]} : vector<2x256xf32> to vector<2x192xf32>
    %cst_48 = arith.constant 5.000000e-01 : f32
    %162 = vector.broadcast %cst_48 : f32 to vector<2x192xf32>
    %163 = arith.mulf %162, %161 : vector<2x192xf32>
    %164 = math.tanh %163 : vector<2x192xf32>
    %cst_49 = arith.constant 1.000000e+00 : f32
    %165 = vector.broadcast %cst_49 : f32 to vector<2x192xf32>
    %166 = arith.addf %164, %165 : vector<2x192xf32>
    %cst_50 = arith.constant 5.000000e-01 : f32
    %167 = vector.broadcast %cst_50 : f32 to vector<2x192xf32>
    %168 = arith.mulf %167, %166 : vector<2x192xf32>
    %169 = vector.extract_strided_slice %160 {offsets = [0, 192], sizes = [2, 64], strides = [1, 1]} : vector<2x256xf32> to vector<2x64xf32>
    %170 = math.tanh %169 : vector<2x64xf32>
    %171 = vector.extract_strided_slice %168 {offsets = [0, 0], sizes = [2, 64], strides = [1, 1]} : vector<2x192xf32> to vector<2x64xf32>
    %172 = vector.extract_strided_slice %168 {offsets = [0, 64], sizes = [2, 64], strides = [1, 1]} : vector<2x192xf32> to vector<2x64xf32>
    %173 = vector.extract_strided_slice %168 {offsets = [0, 128], sizes = [2, 64], strides = [1, 1]} : vector<2x192xf32> to vector<2x64xf32>
    %174 = arith.mulf %172, %154 : vector<2x64xf32>
    %175 = arith.mulf %171, %170 : vector<2x64xf32>
    %176 = arith.addf %174, %175 : vector<2x64xf32>
    %177 = math.tanh %176 : vector<2x64xf32>
    %178 = arith.mulf %173, %177 : vector<2x64xf32>
    %179 = vector.extract_strided_slice %178 {offsets = [0, 0], sizes = [2, 32], strides = [1, 1]} : vector<2x64xf32> to vector<2x32xf32>
    %180 = vector.extract_strided_slice %178 {offsets = [0, 32], sizes = [2, 32], strides = [1, 1]} : vector<2x64xf32> to vector<2x32xf32>
    %181 = vector.shape_cast %179 : vector<2x32xf32> to vector<1x2x32xf32>
    %182 = vector.shape_cast %180 : vector<2x32xf32> to vector<1x2x32xf32>
    %183 = tpu.concatenate %181, %182 in 0 : vector<1x2x32xf32>, vector<1x2x32xf32> -> vector<2x2x32xf32>
    %184 = vector.shape_cast %183 : vector<2x2x32xf32> to vector<2x64xf32>
    %185 = vector.extract_strided_slice %24 {offsets = [0, 0], sizes = [2, 32], strides = [1, 1]} : vector<2x64xf32> to vector<2x32xf32>
    %186 = vector.extract_strided_slice %184 {offsets = [0, 0], sizes = [2, 32], strides = [1, 1]} : vector<2x64xf32> to vector<2x32xf32>
    %187 = arith.mulf %185, %186 : vector<2x32xf32>
    %cst_51 = arith.constant dense<0.000000e+00> : vector<2xf32>
    %188 = vector.multi_reduction <add>, %187, %cst_51 [1] : vector<2x32xf32> to vector<2xf32>
    %189 = vector.shape_cast %188 : vector<2xf32> to vector<2x1xf32>
    %190 = vector.extract_strided_slice %178 {offsets = [0, 32], sizes = [2, 32], strides = [1, 1]} : vector<2x64xf32> to vector<2x32xf32>
    %191 = vector.extract_strided_slice %184 {offsets = [0, 32], sizes = [2, 32], strides = [1, 1]} : vector<2x64xf32> to vector<2x32xf32>
    %192 = arith.mulf %190, %191 : vector<2x32xf32>
    %cst_52 = arith.constant dense<0.000000e+00> : vector<2xf32>
    %193 = vector.multi_reduction <add>, %192, %cst_52 [1] : vector<2x32xf32> to vector<2xf32>
    %194 = vector.shape_cast %193 : vector<2xf32> to vector<2x1xf32>
    %195 = arith.addf %189, %194 : vector<2x1xf32>
    %196 = vector.extract_strided_slice %46 {offsets = [0, 0], sizes = [2, 32], strides = [1, 1]} : vector<2x64xf32> to vector<2x32xf32>
    %197 = vector.extract_strided_slice %184 {offsets = [0, 0], sizes = [2, 32], strides = [1, 1]} : vector<2x64xf32> to vector<2x32xf32>
    %198 = arith.mulf %196, %197 : vector<2x32xf32>
    %cst_53 = arith.constant dense<0.000000e+00> : vector<2xf32>
    %199 = vector.multi_reduction <add>, %198, %cst_53 [1] : vector<2x32xf32> to vector<2xf32>
    %200 = vector.shape_cast %199 : vector<2xf32> to vector<2x1xf32>
    %201 = vector.extract_strided_slice %156 {offsets = [0, 32], sizes = [2, 32], strides = [1, 1]} : vector<2x64xf32> to vector<2x32xf32>
    %202 = vector.extract_strided_slice %184 {offsets = [0, 32], sizes = [2, 32], strides = [1, 1]} : vector<2x64xf32> to vector<2x32xf32>
    %203 = arith.mulf %201, %202 : vector<2x32xf32>
    %cst_54 = arith.constant dense<0.000000e+00> : vector<2xf32>
    %204 = vector.multi_reduction <add>, %203, %cst_54 [1] : vector<2x32xf32> to vector<2xf32>
    %205 = vector.shape_cast %204 : vector<2xf32> to vector<2x1xf32>
    %206 = arith.addf %200, %205 : vector<2x1xf32>
    %207 = vector.extract_strided_slice %68 {offsets = [0, 0], sizes = [2, 32], strides = [1, 1]} : vector<2x64xf32> to vector<2x32xf32>
    %208 = vector.extract_strided_slice %184 {offsets = [0, 0], sizes = [2, 32], strides = [1, 1]} : vector<2x64xf32> to vector<2x32xf32>
    %209 = arith.mulf %207, %208 : vector<2x32xf32>
    %cst_55 = arith.constant dense<0.000000e+00> : vector<2xf32>
    %210 = vector.multi_reduction <add>, %209, %cst_55 [1] : vector<2x32xf32> to vector<2xf32>
    %211 = vector.shape_cast %210 : vector<2xf32> to vector<2x1xf32>
    %212 = vector.extract_strided_slice %134 {offsets = [0, 32], sizes = [2, 32], strides = [1, 1]} : vector<2x64xf32> to vector<2x32xf32>
    %213 = vector.extract_strided_slice %184 {offsets = [0, 32], sizes = [2, 32], strides = [1, 1]} : vector<2x64xf32> to vector<2x32xf32>
    %214 = arith.mulf %212, %213 : vector<2x32xf32>
    %cst_56 = arith.constant dense<0.000000e+00> : vector<2xf32>
    %215 = vector.multi_reduction <add>, %214, %cst_56 [1] : vector<2x32xf32> to vector<2xf32>
    %216 = vector.shape_cast %215 : vector<2xf32> to vector<2x1xf32>
    %217 = arith.addf %211, %216 : vector<2x1xf32>
    %218 = vector.extract_strided_slice %90 {offsets = [0, 0], sizes = [2, 32], strides = [1, 1]} : vector<2x64xf32> to vector<2x32xf32>
    %219 = vector.extract_strided_slice %184 {offsets = [0, 0], sizes = [2, 32], strides = [1, 1]} : vector<2x64xf32> to vector<2x32xf32>
    %220 = arith.mulf %218, %219 : vector<2x32xf32>
    %cst_57 = arith.constant dense<0.000000e+00> : vector<2xf32>
    %221 = vector.multi_reduction <add>, %220, %cst_57 [1] : vector<2x32xf32> to vector<2xf32>
    %222 = vector.shape_cast %221 : vector<2xf32> to vector<2x1xf32>
    %223 = vector.extract_strided_slice %112 {offsets = [0, 32], sizes = [2, 32], strides = [1, 1]} : vector<2x64xf32> to vector<2x32xf32>
    %224 = vector.extract_strided_slice %184 {offsets = [0, 32], sizes = [2, 32], strides = [1, 1]} : vector<2x64xf32> to vector<2x32xf32>
    %225 = arith.mulf %223, %224 : vector<2x32xf32>
    %cst_58 = arith.constant dense<0.000000e+00> : vector<2xf32>
    %226 = vector.multi_reduction <add>, %225, %cst_58 [1] : vector<2x32xf32> to vector<2xf32>
    %227 = vector.shape_cast %226 : vector<2xf32> to vector<2x1xf32>
    %228 = arith.addf %222, %227 : vector<2x1xf32>
    %229 = vector.extract_strided_slice %112 {offsets = [0, 0], sizes = [2, 32], strides = [1, 1]} : vector<2x64xf32> to vector<2x32xf32>
    %230 = vector.extract_strided_slice %184 {offsets = [0, 0], sizes = [2, 32], strides = [1, 1]} : vector<2x64xf32> to vector<2x32xf32>
    %231 = arith.mulf %229, %230 : vector<2x32xf32>
    %cst_59 = arith.constant dense<0.000000e+00> : vector<2xf32>
    %232 = vector.multi_reduction <add>, %231, %cst_59 [1] : vector<2x32xf32> to vector<2xf32>
    %233 = vector.shape_cast %232 : vector<2xf32> to vector<2x1xf32>
    %234 = vector.extract_strided_slice %90 {offsets = [0, 32], sizes = [2, 32], strides = [1, 1]} : vector<2x64xf32> to vector<2x32xf32>
    %235 = vector.extract_strided_slice %184 {offsets = [0, 32], sizes = [2, 32], strides = [1, 1]} : vector<2x64xf32> to vector<2x32xf32>
    %236 = arith.mulf %234, %235 : vector<2x32xf32>
    %cst_60 = arith.constant dense<0.000000e+00> : vector<2xf32>
    %237 = vector.multi_reduction <add>, %236, %cst_60 [1] : vector<2x32xf32> to vector<2xf32>
    %238 = vector.shape_cast %237 : vector<2xf32> to vector<2x1xf32>
    %239 = arith.addf %233, %238 : vector<2x1xf32>
    %240 = vector.extract_strided_slice %134 {offsets = [0, 0], sizes = [2, 32], strides = [1, 1]} : vector<2x64xf32> to vector<2x32xf32>
    %241 = vector.extract_strided_slice %184 {offsets = [0, 0], sizes = [2, 32], strides = [1, 1]} : vector<2x64xf32> to vector<2x32xf32>
    %242 = arith.mulf %240, %241 : vector<2x32xf32>
    %cst_61 = arith.constant dense<0.000000e+00> : vector<2xf32>
    %243 = vector.multi_reduction <add>, %242, %cst_61 [1] : vector<2x32xf32> to vector<2xf32>
    %244 = vector.shape_cast %243 : vector<2xf32> to vector<2x1xf32>
    %245 = vector.extract_strided_slice %68 {offsets = [0, 32], sizes = [2, 32], strides = [1, 1]} : vector<2x64xf32> to vector<2x32xf32>
    %246 = vector.extract_strided_slice %184 {offsets = [0, 32], sizes = [2, 32], strides = [1, 1]} : vector<2x64xf32> to vector<2x32xf32>
    %247 = arith.mulf %245, %246 : vector<2x32xf32>
    %cst_62 = arith.constant dense<0.000000e+00> : vector<2xf32>
    %248 = vector.multi_reduction <add>, %247, %cst_62 [1] : vector<2x32xf32> to vector<2xf32>
    %249 = vector.shape_cast %248 : vector<2xf32> to vector<2x1xf32>
    %250 = arith.addf %244, %249 : vector<2x1xf32>
    %251 = vector.extract_strided_slice %156 {offsets = [0, 0], sizes = [2, 32], strides = [1, 1]} : vector<2x64xf32> to vector<2x32xf32>
    %252 = vector.extract_strided_slice %184 {offsets = [0, 0], sizes = [2, 32], strides = [1, 1]} : vector<2x64xf32> to vector<2x32xf32>
    %253 = arith.mulf %251, %252 : vector<2x32xf32>
    %cst_63 = arith.constant dense<0.000000e+00> : vector<2xf32>
    %254 = vector.multi_reduction <add>, %253, %cst_63 [1] : vector<2x32xf32> to vector<2xf32>
    %255 = vector.shape_cast %254 : vector<2xf32> to vector<2x1xf32>
    %256 = vector.extract_strided_slice %46 {offsets = [0, 32], sizes = [2, 32], strides = [1, 1]} : vector<2x64xf32> to vector<2x32xf32>
    %257 = vector.extract_strided_slice %184 {offsets = [0, 32], sizes = [2, 32], strides = [1, 1]} : vector<2x64xf32> to vector<2x32xf32>
    %258 = arith.mulf %256, %257 : vector<2x32xf32>
    %cst_64 = arith.constant dense<0.000000e+00> : vector<2xf32>
    %259 = vector.multi_reduction <add>, %258, %cst_64 [1] : vector<2x32xf32> to vector<2xf32>
    %260 = vector.shape_cast %259 : vector<2xf32> to vector<2x1xf32>
    %261 = arith.addf %255, %260 : vector<2x1xf32>
    %262 = vector.extract_strided_slice %178 {offsets = [0, 0], sizes = [2, 32], strides = [1, 1]} : vector<2x64xf32> to vector<2x32xf32>
    %263 = vector.extract_strided_slice %184 {offsets = [0, 0], sizes = [2, 32], strides = [1, 1]} : vector<2x64xf32> to vector<2x32xf32>
    %264 = arith.mulf %262, %263 : vector<2x32xf32>
    %cst_65 = arith.constant dense<0.000000e+00> : vector<2xf32>
    %265 = vector.multi_reduction <add>, %264, %cst_65 [1] : vector<2x32xf32> to vector<2xf32>
    %266 = vector.shape_cast %265 : vector<2xf32> to vector<2x1xf32>
    %267 = vector.extract_strided_slice %24 {offsets = [0, 32], sizes = [2, 32], strides = [1, 1]} : vector<2x64xf32> to vector<2x32xf32>
    %268 = vector.extract_strided_slice %184 {offsets = [0, 32], sizes = [2, 32], strides = [1, 1]} : vector<2x64xf32> to vector<2x32xf32>
    %269 = arith.mulf %267, %268 : vector<2x32xf32>
    %cst_66 = arith.constant dense<0.000000e+00> : vector<2xf32>
    %270 = vector.multi_reduction <add>, %269, %cst_66 [1] : vector<2x32xf32> to vector<2xf32>
    %271 = vector.shape_cast %270 : vector<2xf32> to vector<2x1xf32>
    %272 = arith.addf %266, %271 : vector<2x1xf32>
    %273 = tpu.concatenate %195, %206, %217, %228, %239, %250, %261, %272 in 1 : vector<2x1xf32>, vector<2x1xf32>, vector<2x1xf32>, vector<2x1xf32>, vector<2x1xf32>, vector<2x1xf32>, vector<2x1xf32>, vector<2x1xf32> -> vector<2x8xf32>
    %cst_67 = arith.constant dense<0xFF800000> : vector<2xf32>
    %274 = vector.multi_reduction <maximumf>, %273, %cst_67 [1] : vector<2x8xf32> to vector<2xf32>
    %275 = vector.shape_cast %274 : vector<2xf32> to vector<2x1xf32>
    %276 = vector.broadcast %275 : vector<2x1xf32> to vector<2x8xf32>
    %277 = arith.subf %273, %276 : vector<2x8xf32>
    %278 = math.exp %277 : vector<2x8xf32>
    %cst_68 = arith.constant dense<0.000000e+00> : vector<2xf32>
    %279 = vector.multi_reduction <add>, %278, %cst_68 [1] : vector<2x8xf32> to vector<2xf32>
    %280 = vector.shape_cast %279 : vector<2xf32> to vector<2x1xf32>
    %281 = vector.broadcast %280 : vector<2x1xf32> to vector<2x8xf32>
    %282 = arith.divf %278, %281 : vector<2x8xf32>
    %cst_69 = arith.constant 0.000000e+00 : f32
    %283 = vector.broadcast %cst_69 : f32 to vector<2x32xf32>
    %cst_70 = arith.constant 0.000000e+00 : f32
    %284 = vector.broadcast %cst_70 : f32 to vector<2x32xf32>
    %285 = vector.extract_strided_slice %282 {offsets = [0, 0], sizes = [2, 1], strides = [1, 1]} : vector<2x8xf32> to vector<2x1xf32>
    %286 = vector.extract_strided_slice %24 {offsets = [0, 0], sizes = [2, 32], strides = [1, 1]} : vector<2x64xf32> to vector<2x32xf32>
    %287 = vector.broadcast %285 : vector<2x1xf32> to vector<2x32xf32>
    %288 = arith.mulf %287, %286 : vector<2x32xf32>
    %289 = arith.addf %283, %288 : vector<2x32xf32>
    %290 = vector.extract_strided_slice %282 {offsets = [0, 7], sizes = [2, 1], strides = [1, 1]} : vector<2x8xf32> to vector<2x1xf32>
    %291 = vector.extract_strided_slice %24 {offsets = [0, 32], sizes = [2, 32], strides = [1, 1]} : vector<2x64xf32> to vector<2x32xf32>
    %292 = vector.broadcast %290 : vector<2x1xf32> to vector<2x32xf32>
    %293 = arith.mulf %292, %291 : vector<2x32xf32>
    %294 = arith.addf %284, %293 : vector<2x32xf32>
    %295 = vector.extract_strided_slice %282 {offsets = [0, 1], sizes = [2, 1], strides = [1, 1]} : vector<2x8xf32> to vector<2x1xf32>
    %296 = vector.extract_strided_slice %46 {offsets = [0, 0], sizes = [2, 32], strides = [1, 1]} : vector<2x64xf32> to vector<2x32xf32>
    %297 = vector.broadcast %295 : vector<2x1xf32> to vector<2x32xf32>
    %298 = arith.mulf %297, %296 : vector<2x32xf32>
    %299 = arith.addf %289, %298 : vector<2x32xf32>
    %300 = vector.extract_strided_slice %282 {offsets = [0, 6], sizes = [2, 1], strides = [1, 1]} : vector<2x8xf32> to vector<2x1xf32>
    %301 = vector.extract_strided_slice %46 {offsets = [0, 32], sizes = [2, 32], strides = [1, 1]} : vector<2x64xf32> to vector<2x32xf32>
    %302 = vector.broadcast %300 : vector<2x1xf32> to vector<2x32xf32>
    %303 = arith.mulf %302, %301 : vector<2x32xf32>
    %304 = arith.addf %294, %303 : vector<2x32xf32>
    %305 = vector.extract_strided_slice %282 {offsets = [0, 2], sizes = [2, 1], strides = [1, 1]} : vector<2x8xf32> to vector<2x1xf32>
    %306 = vector.extract_strided_slice %68 {offsets = [0, 0], sizes = [2, 32], strides = [1, 1]} : vector<2x64xf32> to vector<2x32xf32>
    %307 = vector.broadcast %305 : vector<2x1xf32> to vector<2x32xf32>
    %308 = arith.mulf %307, %306 : vector<2x32xf32>
    %309 = arith.addf %299, %308 : vector<2x32xf32>
    %310 = vector.extract_strided_slice %282 {offsets = [0, 5], sizes = [2, 1], strides = [1, 1]} : vector<2x8xf32> to vector<2x1xf32>
    %311 = vector.extract_strided_slice %68 {offsets = [0, 32], sizes = [2, 32], strides = [1, 1]} : vector<2x64xf32> to vector<2x32xf32>
    %312 = vector.broadcast %310 : vector<2x1xf32> to vector<2x32xf32>
    %313 = arith.mulf %312, %311 : vector<2x32xf32>
    %314 = arith.addf %304, %313 : vector<2x32xf32>
    %315 = vector.extract_strided_slice %282 {offsets = [0, 3], sizes = [2, 1], strides = [1, 1]} : vector<2x8xf32> to vector<2x1xf32>
    %316 = vector.extract_strided_slice %90 {offsets = [0, 0], sizes = [2, 32], strides = [1, 1]} : vector<2x64xf32> to vector<2x32xf32>
    %317 = vector.broadcast %315 : vector<2x1xf32> to vector<2x32xf32>
    %318 = arith.mulf %317, %316 : vector<2x32xf32>
    %319 = arith.addf %309, %318 : vector<2x32xf32>
    %320 = vector.extract_strided_slice %282 {offsets = [0, 4], sizes = [2, 1], strides = [1, 1]} : vector<2x8xf32> to vector<2x1xf32>
    %321 = vector.extract_strided_slice %90 {offsets = [0, 32], sizes = [2, 32], strides = [1, 1]} : vector<2x64xf32> to vector<2x32xf32>
    %322 = vector.broadcast %320 : vector<2x1xf32> to vector<2x32xf32>
    %323 = arith.mulf %322, %321 : vector<2x32xf32>
    %324 = arith.addf %314, %323 : vector<2x32xf32>
    %325 = vector.extract_strided_slice %282 {offsets = [0, 4], sizes = [2, 1], strides = [1, 1]} : vector<2x8xf32> to vector<2x1xf32>
    %326 = vector.extract_strided_slice %112 {offsets = [0, 0], sizes = [2, 32], strides = [1, 1]} : vector<2x64xf32> to vector<2x32xf32>
    %327 = vector.broadcast %325 : vector<2x1xf32> to vector<2x32xf32>
    %328 = arith.mulf %327, %326 : vector<2x32xf32>
    %329 = arith.addf %319, %328 : vector<2x32xf32>
    %330 = vector.extract_strided_slice %282 {offsets = [0, 3], sizes = [2, 1], strides = [1, 1]} : vector<2x8xf32> to vector<2x1xf32>
    %331 = vector.extract_strided_slice %112 {offsets = [0, 32], sizes = [2, 32], strides = [1, 1]} : vector<2x64xf32> to vector<2x32xf32>
    %332 = vector.broadcast %330 : vector<2x1xf32> to vector<2x32xf32>
    %333 = arith.mulf %332, %331 : vector<2x32xf32>
    %334 = arith.addf %324, %333 : vector<2x32xf32>
    %335 = vector.extract_strided_slice %282 {offsets = [0, 5], sizes = [2, 1], strides = [1, 1]} : vector<2x8xf32> to vector<2x1xf32>
    %336 = vector.extract_strided_slice %134 {offsets = [0, 0], sizes = [2, 32], strides = [1, 1]} : vector<2x64xf32> to vector<2x32xf32>
    %337 = vector.broadcast %335 : vector<2x1xf32> to vector<2x32xf32>
    %338 = arith.mulf %337, %336 : vector<2x32xf32>
    %339 = arith.addf %329, %338 : vector<2x32xf32>
    %340 = vector.extract_strided_slice %282 {offsets = [0, 2], sizes = [2, 1], strides = [1, 1]} : vector<2x8xf32> to vector<2x1xf32>
    %341 = vector.extract_strided_slice %134 {offsets = [0, 32], sizes = [2, 32], strides = [1, 1]} : vector<2x64xf32> to vector<2x32xf32>
    %342 = vector.broadcast %340 : vector<2x1xf32> to vector<2x32xf32>
    %343 = arith.mulf %342, %341 : vector<2x32xf32>
    %344 = arith.addf %334, %343 : vector<2x32xf32>
    %345 = vector.extract_strided_slice %282 {offsets = [0, 6], sizes = [2, 1], strides = [1, 1]} : vector<2x8xf32> to vector<2x1xf32>
    %346 = vector.extract_strided_slice %156 {offsets = [0, 0], sizes = [2, 32], strides = [1, 1]} : vector<2x64xf32> to vector<2x32xf32>
    %347 = vector.broadcast %345 : vector<2x1xf32> to vector<2x32xf32>
    %348 = arith.mulf %347, %346 : vector<2x32xf32>
    %349 = arith.addf %339, %348 : vector<2x32xf32>
    %350 = vector.extract_strided_slice %282 {offsets = [0, 1], sizes = [2, 1], strides = [1, 1]} : vector<2x8xf32> to vector<2x1xf32>
    %351 = vector.extract_strided_slice %156 {offsets = [0, 32], sizes = [2, 32], strides = [1, 1]} : vector<2x64xf32> to vector<2x32xf32>
    %352 = vector.broadcast %350 : vector<2x1xf32> to vector<2x32xf32>
    %353 = arith.mulf %352, %351 : vector<2x32xf32>
    %354 = arith.addf %344, %353 : vector<2x32xf32>
    %355 = vector.extract_strided_slice %282 {offsets = [0, 7], sizes = [2, 1], strides = [1, 1]} : vector<2x8xf32> to vector<2x1xf32>
    %356 = vector.extract_strided_slice %178 {offsets = [0, 0], sizes = [2, 32], strides = [1, 1]} : vector<2x64xf32> to vector<2x32xf32>
    %357 = vector.broadcast %355 : vector<2x1xf32> to vector<2x32xf32>
    %358 = arith.mulf %357, %356 : vector<2x32xf32>
    %359 = arith.addf %349, %358 : vector<2x32xf32>
    %360 = vector.extract_strided_slice %282 {offsets = [0, 0], sizes = [2, 1], strides = [1, 1]} : vector<2x8xf32> to vector<2x1xf32>
    %361 = vector.extract_strided_slice %178 {offsets = [0, 32], sizes = [2, 32], strides = [1, 1]} : vector<2x64xf32> to vector<2x32xf32>
    %362 = vector.broadcast %360 : vector<2x1xf32> to vector<2x32xf32>
    %363 = arith.mulf %362, %361 : vector<2x32xf32>
    %364 = arith.addf %354, %363 : vector<2x32xf32>
    %365 = tpu.concatenate %359, %364 in 1 : vector<2x32xf32>, vector<2x32xf32> -> vector<2x64xf32>
    %c0_71 = arith.constant 0 : index
    %c0_72 = arith.constant 0 : index
    %366 = vector.load %arg2[%c0_71, %c0_72] : memref<64x2xf32, #tpu.memory_space<vmem>>, vector<64x2xf32>
    %cst_73 = arith.constant dense<0.000000e+00> : vector<2x2xf32>
    %367 = tpu.matmul %365, %366, %cst_73 {dimension_numbers = #tpu.dot_dimension_numbers<[1], [0], [0], [1], [0, 0, 1, 1], [], []>} : vector<2x64xf32>, vector<64x2xf32>, vector<2x2xf32> -> vector<2x2xf32>
    %c0_74 = arith.constant 0 : index
    %c0_75 = arith.constant 0 : index
    %368 = vector.load %arg3[%c0_74, %c0_75] : memref<1x2xf32, #tpu.memory_space<vmem>>, vector<1x2xf32>
    %369 = vector.broadcast %368 : vector<1x2xf32> to vector<2x2xf32>
    %370 = arith.addf %367, %369 : vector<2x2xf32>
    %c0_76 = arith.constant 0 : index
    %c0_77 = arith.constant 0 : index
    %371 = vector.load %arg4[%c0_76, %c0_77] : memref<2x2xf32, #tpu.memory_space<vmem>>, vector<2x2xf32>
    tpu.vector_store %arg4[%c0_76, %c0_77], %370 {strides = array<i32>} : memref<2x2xf32, #tpu.memory_space<vmem>>, vector<2x2xf32>,
    %c0_78 = arith.constant 0 : index
    %c0_79 = arith.constant 0 : index
    %372 = vector.load %arg5[%c0_78, %c0_79] : memref<2x8xf32, #tpu.memory_space<vmem>>, vector<2x8xf32>
    tpu.vector_store %arg5[%c0_78, %c0_79], %282 {strides = array<i32>} : memref<2x8xf32, #tpu.memory_space<vmem>>, vector<2x8xf32>,
    return
  }
}

</mosaic_0001>

<llo_original>
// kernel: bilstm_attention_forward.1
$region0: #{bilstm_attention_forward.1}
  #allocation0 [shape = 'u32[]', space=smem, size = 0x4, offset = 0x4, fixed_abs, tag = 'smem constant byte address 0x4 - core index']
  #allocation1 [shape = 'u32[144,128]{1,0:T(1,128)}', space=vmem, size = 0x12000, scoped, tag = 'internal scratch']
  %s0 = inlined_call_operand.vmem [shape: f32[8,2,256], index: 0, kind: input, shape index: {}]
  %s1 = inlined_call_operand.vmem [shape: f32[64,256], index: 1, kind: input, shape index: {}]
  %s2 = inlined_call_operand.vmem [shape: f32[64,2], index: 2, kind: input, shape index: {}]
  %s3 = inlined_call_operand.vmem [shape: f32[1,2], index: 3, kind: input, shape index: {}]
  %s4 = inlined_call_operand.hbm [shape: f32[2,2], index: 4, kind: output, shape index: {0}]
  %s5 = inlined_call_operand.hbm [shape: f32[2,8], index: 5, kind: output, shape index: {1}]
  %6 = xla_tuple %s4, %s5
  %s7 = sld [smem:[#allocation0]]
  $region34: #{bilstm_attention_forward.1} parent=0
    _
  %s9 = ssub.s32 1, %s7
  %s10 = scalar_select 0, %s9, %s7
  $region1: #{bilstm_attention_forward.1} parent=0
    #allocation2 [shape = 'u8[1024]{0}', space=vmem, size = 0x400, scoped, tag = 'output window, operand 0, single buffered']
    #allocation3 [shape = 's32[1]{0}', space=sflag, size = 0x4, scoped, tag = 'scoped memory for bilstm_attention_forward.1']
    #allocation4 [shape = 'u8[1024]{0}', space=vmem, size = 0x400, scoped, tag = 'output window, operand 1, single buffered']
    #allocation5 [shape = 's32[1]{0}', space=sflag, size = 0x4, scoped, tag = 'scoped memory for bilstm_attention_forward.1']
    %11 = vsyncpa [#allocation3], 0
    %12 = vsyncpa [#allocation5], 0
    // Predicated region
    $region2: #{bilstm_attention_forward.1} parent=1 // pred_check
      _
    $region3: #{bilstm_attention_forward.1} parent=1 // pred_check_branch
      %14 = sbr.rel (0) target = $region5
    $region4: #{bilstm_attention_forward.1} parent=1 // pred_region
      _
    $region5: #{bilstm_attention_forward.1} parent=1 // pred_fallthru
      _
    // Predicated region
    $region6: #{bilstm_attention_forward.1} parent=1 // pred_check
      _
    $region7: #{bilstm_attention_forward.1} parent=1 // pred_check_branch
      %16 = sbr.rel (0) target = $region9
    $region8: #{bilstm_attention_forward.1} parent=1 // pred_region
      _
    $region9: #{bilstm_attention_forward.1} parent=1 // pred_fallthru
      _
    // Predicated region
    $region10: #{bilstm_attention_forward.1} parent=1 // pred_check
      _
    $region11: #{bilstm_attention_forward.1} parent=1 // pred_check_branch
      %18 = sbr.rel (0) target = $region13
    $region12: #{bilstm_attention_forward.1} parent=1 // pred_region
      _
    $region13: #{bilstm_attention_forward.1} parent=1 // pred_fallthru
      _
    // Predicated region
    $region14: #{bilstm_attention_forward.1} parent=1 // pred_check
      _
    $region15: #{bilstm_attention_forward.1} parent=1 // pred_check_branch
      %20 = sbr.rel (0) target = $region17
    $region16: #{bilstm_attention_forward.1} parent=1 // pred_region
      _
    $region17: #{bilstm_attention_forward.1} parent=1 // pred_fallthru
      _
    %v21 = vld [vmem:[%s1] sm:$0xff]
    %v22 = vld [vmem:[%s1 + $0x8] sm:$0xff]
    %v23 = vld [vmem:[%s1 + $0x10] sm:$0xff]
    %v24 = vld [vmem:[%s1 + $0x18] sm:$0xff]
    %v25 = vld [vmem:[%s1 + $0x20] sm:$0xff]
    %v26 = vld [vmem:[%s1 + $0x28] sm:$0xff]
    %v27 = vld [vmem:[%s1 + $0x30] sm:$0xff]
    %v28 = vld [vmem:[%s1 + $0x38] sm:$0xff]
    %v29 = vld [vmem:[%s1 + $0x40] sm:$0xff]
    %v30 = vld [vmem:[%s1 + $0x48] sm:$0xff]
    %v31 = vld [vmem:[%s1 + $0x50] sm:$0xff]
    %v32 = vld [vmem:[%s1 + $0x58] sm:$0xff]
    %v33 = vld [vmem:[%s1 + $0x60] sm:$0xff]
    %v34 = vld [vmem:[%s1 + $0x68] sm:$0xff]
    %v35 = vld [vmem:[%s1 + $0x70] sm:$0xff]
    %v36 = vld [vmem:[%s1 + $0x78] sm:$0xff]
    %v37 = vld [vmem:[%s0] sm:$0xf]
    %vm38 = vcmask 523264
    %v40 = vsel %vm38, 0.0, 0
    %42 = vmatprep.subr.mxu0 %v22
    %43 = vmatpush1.msra.mxu0 %v21
    %44 = vmatprep.subr.mxu0 %v24
    %45 = vmatpush1.msra.mxu0 %v23
    %46 = vmatprep.subr.mxu0 %v26
    %47 = vmatpush1.msra.mxu0 %v25
    %48 = vmatprep.subr.mxu0 %v28
    %49 = vmatpush1.msra.mxu0 %v27
    %50 = vmatprep.subr.mxu0 %v30
    %51 = vmatpush1.msra.mxu0 %v29
    %52 = vmatprep.subr.mxu0 %v32
    %53 = vmatpush1.msra.mxu0 %v31
    %54 = vmatprep.subr.mxu0 %v34
    %55 = vmatpush1.msra.mxu0 %v33
    %56 = vmatprep.subr.mxu0 %v36
    %57 = vmatpush1.msra.mxu0 %v35
    %58 = vmatprep.subr.mxu0 0.0
    %59 = vmatpush1.msra.mxu0 0.0
    %60 = vmatprep.subr.mxu0 0.0
    %61 = vmatpush1.msra.mxu0 0.0
    %62 = vmatprep.subr.mxu0 0.0
    %63 = vmatpush1.msra.mxu0 0.0
    %64 = vmatprep.subr.mxu0 0.0
    %65 = vmatpush1.msra.mxu0 0.0
    %66 = vmatprep.subr.mxu0 0.0
    %67 = vmatpush1.msra.mxu0 0.0
    %68 = vmatprep.subr.mxu0 0.0
    %69 = vmatpush1.msra.mxu0 0.0
    %70 = vmatprep.subr.mxu0 0.0
    %71 = vmatpush1.msra.mxu0 0.0
    %72 = vmatprep.subr.mxu0 0.0
    %73 = vmatpush1.msra.mxu0 0.0
    %74 = vmatprep.subr.mxu0 0.0
    %75 = vmatpush1.msra.mxu0 0.0
    %76 = vmatprep.subr.mxu0 0.0
    %77 = vmatpush1.msra.mxu0 0.0
    %78 = vmatprep.subr.mxu0 0.0
    %79 = vmatpush1.msra.mxu0 0.0
    %80 = vmatprep.subr.mxu0 0.0
    %81 = vmatpush1.msra.mxu0 0.0
    %82 = vmatprep.subr.mxu0 0.0
    %83 = vmatpush1.msra.mxu0 0.0
    %84 = vmatprep.subr.mxu0 0.0
    %85 = vmatpush1.msra.mxu0 0.0
    %86 = vmatprep.subr.mxu0 0.0
    %87 = vmatpush1.msra.mxu0 0.0
    %88 = vmatprep.subr.mxu0 0.0
    %89 = vmatpush1.msra.mxu0 0.0
    %90 = vmatprep.subr.mxu0 0.0
    %91 = vmatpush1.msra.mxu0 0.0
    %92 = vmatprep.subr.mxu0 0.0
    %93 = vmatpush1.msra.mxu0 0.0
    %94 = vmatprep.subr.mxu0 0.0
    %95 = vmatpush1.msra.mxu0 0.0
    %96 = vmatprep.subr.mxu0 0.0
    %97 = vmatpush1.msra.mxu0 0.0
    %98 = vmatprep.subr.mxu0 0.0
    %99 = vmatpush1.msra.mxu0 0.0
    %100 = vmatprep.subr.mxu0 0.0
    %101 = vmatpush1.msra.mxu0 0.0
    %102 = vmatprep.subr.mxu0 0.0
    %103 = vmatpush1.msra.mxu0 0.0
    %104 = vmatprep.subr.mxu0 0.0
    %105 = vmatpush1.msra.mxu0 0.0
    %106 = vmatprep.mubr.f32.mxu0 0.0
    %107 = vmatmul.mubr.f32.gmra.mrb[0].mxu0 %v40
    %v108 = vpop.f32.mrb[0].mxu0
    %v109 = vadd.f32 0.0, %v108
    %v110 = vpop.f32.mrb[0].mxu0
    %v111 = vadd.f32 0.0, %v110
    %112 = vdwg.mxu0
    %v115 = vcombine.low %v109, %v111
    %v117 = vunpack.c.l.s4 1983009808
    %v118 = vunpack.c.0.s8 %v117
    %v119 = vlaneseq
    %v120 = vshrl.u32 %v119, 7
    %v121 = vsub.s32 %v118, %v120
    %v122 = vrot.slane %v115, %v121
    %v124 = vadd.f32 %v37, %v122
    %v125 = vmul.f32 %v124, 0.5
    %v126 = vtanh.pop %v125
    %v127 = vadd.f32 %v126, 1.0
    %v128 = vmul.f32 %v127, 0.5
    %130 = vrot.lane.b32.xlu0 %v124, 64
    %v131 = vpop.permute.xlu0 %130
    %v132 = vrot.slane %v131, 2
    %v134 = vtanh.pop %v132
    %v135 = vmul.f32 %v128, 0.0
    %v136 = vmul.f32 %v128, %v134
    %138 = vrot.lane.b32.xlu0 %v136, 64
    %v139 = vpop.permute.xlu0 %138
    %v141 = vadd.f32 %v135, %v139
    %v142 = vtanh.pop %v141
    %v144 = vrot.slane %v128, 2
    %147 = vrot.lane.b32.xlu0 %v142, 64
    %v148 = vpop.permute.xlu0 %147
    %v150 = vmul.f32 %v144, %v148
    %s151 = scalar_lea.vmem %s0, 4
    %v152 = vld [vmem:[%s151] sm:$0xf]
    %v154 = vsel %vm38, %v150, 0
    %156 = vmatprep.subr.mxu0 %v22
    %157 = vmatpush1.msra.mxu0 %v21
    %158 = vmatprep.subr.mxu0 %v24
    %159 = vmatpush1.msra.mxu0 %v23
    %160 = vmatprep.subr.mxu0 %v26
    %161 = vmatpush1.msra.mxu0 %v25
    %162 = vmatprep.subr.mxu0 %v28
    %163 = vmatpush1.msra.mxu0 %v27
    %164 = vmatprep.subr.mxu0 %v30
    %165 = vmatpush1.msra.mxu0 %v29
    %166 = vmatprep.subr.mxu0 %v32
    %167 = vmatpush1.msra.mxu0 %v31
    %168 = vmatprep.subr.mxu0 %v34
    %169 = vmatpush1.msra.mxu0 %v33
    %170 = vmatprep.subr.mxu0 %v36
    %171 = vmatpush1.msra.mxu0 %v35
    %172 = vmatprep.subr.mxu0 0.0
    %173 = vmatpush1.msra.mxu0 0.0
    %174 = vmatprep.subr.mxu0 0.0
    %175 = vmatpush1.msra.mxu0 0.0
    %176 = vmatprep.subr.mxu0 0.0
    %177 = vmatpush1.msra.mxu0 0.0
    %178 = vmatprep.subr.mxu0 0.0
    %179 = vmatpush1.msra.mxu0 0.0
    %180 = vmatprep.subr.mxu0 0.0
    %181 = vmatpush1.msra.mxu0 0.0
    %182 = vmatprep.subr.mxu0 0.0
    %183 = vmatpush1.msra.mxu0 0.0
    %184 = vmatprep.subr.mxu0 0.0
    %185 = vmatpush1.msra.mxu0 0.0
    %186 = vmatprep.subr.mxu0 0.0
    %187 = vmatpush1.msra.mxu0 0.0
    %188 = vmatprep.subr.mxu0 0.0
    %189 = vmatpush1.msra.mxu0 0.0
    %190 = vmatprep.subr.mxu0 0.0
    %191 = vmatpush1.msra.mxu0 0.0
    %192 = vmatprep.subr.mxu0 0.0
    %193 = vmatpush1.msra.mxu0 0.0
    %194 = vmatprep.subr.mxu0 0.0
    %195 = vmatpush1.msra.mxu0 0.0
    %196 = vmatprep.subr.mxu0 0.0
    %197 = vmatpush1.msra.mxu0 0.0
    %198 = vmatprep.subr.mxu0 0.0
    %199 = vmatpush1.msra.mxu0 0.0
    %200 = vmatprep.subr.mxu0 0.0
    %201 = vmatpush1.msra.mxu0 0.0
    %202 = vmatprep.subr.mxu0 0.0
    %203 = vmatpush1.msra.mxu0 0.0
    %204 = vmatprep.subr.mxu0 0.0
    %205 = vmatpush1.msra.mxu0 0.0
    %206 = vmatprep.subr.mxu0 0.0
    %207 = vmatpush1.msra.mxu0 0.0
    %208 = vmatprep.subr.mxu0 0.0
    %209 = vmatpush1.msra.mxu0 0.0
    %210 = vmatprep.subr.mxu0 0.0
    %211 = vmatpush1.msra.mxu0 0.0
    %212 = vmatprep.subr.mxu0 0.0
    %213 = vmatpush1.msra.mxu0 0.0
    %214 = vmatprep.subr.mxu0 0.0
    %215 = vmatpush1.msra.mxu0 0.0
    %216 = vmatprep.subr.mxu0 0.0
    %217 = vmatpush1.msra.mxu0 0.0
    %218 = vmatprep.subr.mxu0 0.0
    %219 = vmatpush1.msra.mxu0 0.0
    %220 = vmatprep.mubr.f32.mxu0 0.0
    %221 = vmatmul.mubr.f32.gmra.mrb[0].mxu0 %v154
    %v222 = vpop.f32.mrb[0].mxu0
    %v223 = vadd.f32 0.0, %v222
    %v224 = vpop.f32.mrb[0].mxu0
    %v225 = vadd.f32 0.0, %v224
    %226 = vdwg.mxu0
    %v229 = vcombine.low %v223, %v225
    %v231 = vunpack.c.l.s4 1983009808
    %v232 = vunpack.c.0.s8 %v231
    %v233 = vlaneseq
    %v234 = vshrl.u32 %v233, 7
    %v235 = vsub.s32 %v232, %v234
    %v236 = vrot.slane %v229, %v235
    %v238 = vadd.f32 %v152, %v236
    %v239 = vmul.f32 %v238, 0.5
    %v240 = vtanh.pop %v239
    %v241 = vadd.f32 %v240, 1.0
    %v242 = vmul.f32 %v241, 0.5
    %244 = vrot.lane.b32.xlu0 %v238, 64
    %v245 = vpop.permute.xlu0 %244
    %v246 = vrot.slane %v245, 2
    %v248 = vtanh.pop %v246
    %v249 = vmul.f32 %v242, %v141
    %v250 = vmul.f32 %v242, %v248
    %252 = vrot.lane.b32.xlu0 %v250, 64
    %v253 = vpop.permute.xlu0 %252
    %v255 = vadd.f32 %v249, %v253
    %v256 = vtanh.pop %v255
    %v258 = vrot.slane %v242, 2
    %261 = vrot.lane.b32.xlu0 %v256, 64
    %v262 = vpop.permute.xlu0 %261
    %v264 = vmul.f32 %v258, %v262
    %s265 = scalar_lea.vmem %s0, 8
    %v266 = vld [vmem:[%s265] sm:$0xf]
    %v268 = vsel %vm38, %v264, 0
    %270 = vmatprep.subr.mxu0 %v22
    %271 = vmatpush1.msra.mxu0 %v21
    %272 = vmatprep.subr.mxu0 %v24
    %273 = vmatpush1.msra.mxu0 %v23
    %274 = vmatprep.subr.mxu0 %v26
    %275 = vmatpush1.msra.mxu0 %v25
    %276 = vmatprep.subr.mxu0 %v28
    %277 = vmatpush1.msra.mxu0 %v27
    %278 = vmatprep.subr.mxu0 %v30
    %279 = vmatpush1.msra.mxu0 %v29
    %280 = vmatprep.subr.mxu0 %v32
    %281 = vmatpush1.msra.mxu0 %v31
    %282 = vmatprep.subr.mxu0 %v34
    %283 = vmatpush1.msra.mxu0 %v33
    %284 = vmatprep.subr.mxu0 %v36
    %285 = vmatpush1.msra.mxu0 %v35
    %286 = vmatprep.subr.mxu0 0.0
    %287 = vmatpush1.msra.mxu0 0.0
    %288 = vmatprep.subr.mxu0 0.0
    %289 = vmatpush1.msra.mxu0 0.0
    %290 = vmatprep.subr.mxu0 0.0
    %291 = vmatpush1.msra.mxu0 0.0
    %292 = vmatprep.subr.mxu0 0.0
    %293 = vmatpush1.msra.mxu0 0.0
    %294 = vmatprep.subr.mxu0 0.0
    %295 = vmatpush1.msra.mxu0 0.0
    %296 = vmatprep.subr.mxu0 0.0
    %297 = vmatpush1.msra.mxu0 0.0
    %298 = vmatprep.subr.mxu0 0.0
    %299 = vmatpush1.msra.mxu0 0.0
    %300 = vmatprep.subr.mxu0 0.0
    %301 = vmatpush1.msra.mxu0 0.0
    %302 = vmatprep.subr.mxu0 0.0
    %303 = vmatpush1.msra.mxu0 0.0
    %304 = vmatprep.subr.mxu0 0.0
    %305 = vmatpush1.msra.mxu0 0.0
    %306 = vmatprep.subr.mxu0 0.0
    %307 = vmatpush1.msra.mxu0 0.0
    %308 = vmatprep.subr.mxu0 0.0
    %309 = vmatpush1.msra.mxu0 0.0
    %310 = vmatprep.subr.mxu0 0.0
    %311 = vmatpush1.msra.mxu0 0.0
    %312 = vmatprep.subr.mxu0 0.0
    %313 = vmatpush1.msra.mxu0 0.0
    %314 = vmatprep.subr.mxu0 0.0
    %315 = vmatpush1.msra.mxu0 0.0
    %316 = vmatprep.subr.mxu0 0.0
    %317 = vmatpush1.msra.mxu0 0.0
    %318 = vmatprep.subr.mxu0 0.0
    %319 = vmatpush1.msra.mxu0 0.0
    %320 = vmatprep.subr.mxu0 0.0
    %321 = vmatpush1.msra.mxu0 0.0
    %322 = vmatprep.subr.mxu0 0.0
    %323 = vmatpush1.msra.mxu0 0.0
    %324 = vmatprep.subr.mxu0 0.0
    %325 = vmatpush1.msra.mxu0 0.0
    %326 = vmatprep.subr.mxu0 0.0
    %327 = vmatpush1.msra.mxu0 0.0
    %328 = vmatprep.subr.mxu0 0.0
    %329 = vmatpush1.msra.mxu0 0.0
    %330 = vmatprep.subr.mxu0 0.0
    %331 = vmatpush1.msra.mxu0 0.0
    %332 = vmatprep.subr.mxu0 0.0
    %333 = vmatpush1.msra.mxu0 0.0
    %334 = vmatprep.mubr.f32.mxu0 0.0
    %335 = vmatmul.mubr.f32.gmra.mrb[0].mxu0 %v268
    %v336 = vpop.f32.mrb[0].mxu0
    %v337 = vadd.f32 0.0, %v336
    %v338 = vpop.f32.mrb[0].mxu0
    %v339 = vadd.f32 0.0, %v338
    %340 = vdwg.mxu0
    %v343 = vcombine.low %v337, %v339
    %v345 = vunpack.c.l.s4 1983009808
    %v346 = vunpack.c.0.s8 %v345
    %v347 = vlaneseq
    %v348 = vshrl.u32 %v347, 7
    %v349 = vsub.s32 %v346, %v348
    %v350 = vrot.slane %v343, %v349
    %v352 = vadd.f32 %v266, %v350
    %v353 = vmul.f32 %v352, 0.5
    %v354 = vtanh.pop %v353
    %v355 = vadd.f32 %v354, 1.0
    %v356 = vmul.f32 %v355, 0.5
    %358 = vrot.lane.b32.xlu0 %v352, 64
    %v359 = vpop.permute.xlu0 %358
    %v360 = vrot.slane %v359, 2
    %v362 = vtanh.pop %v360
    %v363 = vmul.f32 %v356, %v255
    %v364 = vmul.f32 %v356, %v362
    %366 = vrot.lane.b32.xlu0 %v364, 64
    %v367 = vpop.permute.xlu0 %366
    %v369 = vadd.f32 %v363, %v367
    %v370 = vtanh.pop %v369
    %v372 = vrot.slane %v356, 2
    %375 = vrot.lane.b32.xlu0 %v370, 64
    %v376 = vpop.permute.xlu0 %375
    %v378 = vmul.f32 %v372, %v376
    %s379 = scalar_lea.vmem %s0, 12
    %v380 = vld [vmem:[%s379] sm:$0xf]
    %v382 = vsel %vm38, %v378, 0
    %384 = vmatprep.subr.mxu0 %v22
    %385 = vmatpush1.msra.mxu0 %v21
    %386 = vmatprep.subr.mxu0 %v24
    %387 = vmatpush1.msra.mxu0 %v23
    %388 = vmatprep.subr.mxu0 %v26
    %389 = vmatpush1.msra.mxu0 %v25
    %390 = vmatprep.subr.mxu0 %v28
    %391 = vmatpush1.msra.mxu0 %v27
    %392 = vmatprep.subr.mxu0 %v30
    %393 = vmatpush1.msra.mxu0 %v29
    %394 = vmatprep.subr.mxu0 %v32
    %395 = vmatpush1.msra.mxu0 %v31
    %396 = vmatprep.subr.mxu0 %v34
    %397 = vmatpush1.msra.mxu0 %v33
    %398 = vmatprep.subr.mxu0 %v36
    %399 = vmatpush1.msra.mxu0 %v35
    %400 = vmatprep.subr.mxu0 0.0
    %401 = vmatpush1.msra.mxu0 0.0
    %402 = vmatprep.subr.mxu0 0.0
    %403 = vmatpush1.msra.mxu0 0.0
    %404 = vmatprep.subr.mxu0 0.0
    %405 = vmatpush1.msra.mxu0 0.0
    %406 = vmatprep.subr.mxu0 0.0
    %407 = vmatpush1.msra.mxu0 0.0
    %408 = vmatprep.subr.mxu0 0.0
    %409 = vmatpush1.msra.mxu0 0.0
    %410 = vmatprep.subr.mxu0 0.0
    %411 = vmatpush1.msra.mxu0 0.0
    %412 = vmatprep.subr.mxu0 0.0
    %413 = vmatpush1.msra.mxu0 0.0
    %414 = vmatprep.subr.mxu0 0.0
    %415 = vmatpush1.msra.mxu0 0.0
    %416 = vmatprep.subr.mxu0 0.0
    %417 = vmatpush1.msra.mxu0 0.0
    %418 = vmatprep.subr.mxu0 0.0
    %419 = vmatpush1.msra.mxu0 0.0
    %420 = vmatprep.subr.mxu0 0.0
    %421 = vmatpush1.msra.mxu0 0.0
    %422 = vmatprep.subr.mxu0 0.0
    %423 = vmatpush1.msra.mxu0 0.0
    %424 = vmatprep.subr.mxu0 0.0
    %425 = vmatpush1.msra.mxu0 0.0
    %426 = vmatprep.subr.mxu0 0.0
    %427 = vmatpush1.msra.mxu0 0.0
    %428 = vmatprep.subr.mxu0 0.0
    %429 = vmatpush1.msra.mxu0 0.0
    %430 = vmatprep.subr.mxu0 0.0
    %431 = vmatpush1.msra.mxu0 0.0
    %432 = vmatprep.subr.mxu0 0.0
    %433 = vmatpush1.msra.mxu0 0.0
    %434 = vmatprep.subr.mxu0 0.0
    %435 = vmatpush1.msra.mxu0 0.0
    %436 = vmatprep.subr.mxu0 0.0
    %437 = vmatpush1.msra.mxu0 0.0
    %438 = vmatprep.subr.mxu0 0.0
    %439 = vmatpush1.msra.mxu0 0.0
    %440 = vmatprep.subr.mxu0 0.0
    %441 = vmatpush1.msra.mxu0 0.0
    %442 = vmatprep.subr.mxu0 0.0
    %443 = vmatpush1.msra.mxu0 0.0
    %444 = vmatprep.subr.mxu0 0.0
    %445 = vmatpush1.msra.mxu0 0.0
    %446 = vmatprep.subr.mxu0 0.0
    %447 = vmatpush1.msra.mxu0 0.0
    %448 = vmatprep.mubr.f32.mxu0 0.0
    %449 = vmatmul.mubr.f32.gmra.mrb[0].mxu0 %v382
    %v450 = vpop.f32.mrb[0].mxu0
    %v451 = vadd.f32 0.0, %v450
    %v452 = vpop.f32.mrb[0].mxu0
    %v453 = vadd.f32 0.0, %v452
    %454 = vdwg.mxu0
    %v457 = vcombine.low %v451, %v453
    %v459 = vunpack.c.l.s4 1983009808
    %v460 = vunpack.c.0.s8 %v459
    %v461 = vlaneseq
    %v462 = vshrl.u32 %v461, 7
    %v463 = vsub.s32 %v460, %v462
    %v464 = vrot.slane %v457, %v463
    %v466 = vadd.f32 %v380, %v464
    %v467 = vmul.f32 %v466, 0.5
    %v468 = vtanh.pop %v467
    %v469 = vadd.f32 %v468, 1.0
    %v470 = vmul.f32 %v469, 0.5
    %472 = vrot.lane.b32.xlu0 %v466, 64
    %v473 = vpop.permute.xlu0 %472
    %v474 = vrot.slane %v473, 2
    %v476 = vtanh.pop %v474
    %v477 = vmul.f32 %v470, %v369
    %v478 = vmul.f32 %v470, %v476
    %480 = vrot.lane.b32.xlu0 %v478, 64
    %v481 = vpop.permute.xlu0 %480
    %v483 = vadd.f32 %v477, %v481
    %v484 = vtanh.pop %v483
    %v486 = vrot.slane %v470, 2
    %489 = vrot.lane.b32.xlu0 %v484, 64
    %v490 = vpop.permute.xlu0 %489
    %v492 = vmul.f32 %v486, %v490
    %s493 = scalar_lea.vmem %s0, 16
    %v494 = vld [vmem:[%s493] sm:$0xf]
    %v496 = vsel %vm38, %v492, 0
    %498 = vmatprep.subr.mxu0 %v22
    %499 = vmatpush1.msra.mxu0 %v21
    %500 = vmatprep.subr.mxu0 %v24
    %501 = vmatpush1.msra.mxu0 %v23
    %502 = vmatprep.subr.mxu0 %v26
    %503 = vmatpush1.msra.mxu0 %v25
    %504 = vmatprep.subr.mxu0 %v28
    %505 = vmatpush1.msra.mxu0 %v27
    %506 = vmatprep.subr.mxu0 %v30
    %507 = vmatpush1.msra.mxu0 %v29
    %508 = vmatprep.subr.mxu0 %v32
    %509 = vmatpush1.msra.mxu0 %v31
    %510 = vmatprep.subr.mxu0 %v34
    %511 = vmatpush1.msra.mxu0 %v33
    %512 = vmatprep.subr.mxu0 %v36
    %513 = vmatpush1.msra.mxu0 %v35
    %514 = vmatprep.subr.mxu0 0.0
    %515 = vmatpush1.msra.mxu0 0.0
    %516 = vmatprep.subr.mxu0 0.0
    %517 = vmatpush1.msra.mxu0 0.0
    %518 = vmatprep.subr.mxu0 0.0
    %519 = vmatpush1.msra.mxu0 0.0
    %520 = vmatprep.subr.mxu0 0.0
    %521 = vmatpush1.msra.mxu0 0.0
    %522 = vmatprep.subr.mxu0 0.0
    %523 = vmatpush1.msra.mxu0 0.0
    %524 = vmatprep.subr.mxu0 0.0
    %525 = vmatpush1.msra.mxu0 0.0
    %526 = vmatprep.subr.mxu0 0.0
    %527 = vmatpush1.msra.mxu0 0.0
    %528 = vmatprep.subr.mxu0 0.0
    %529 = vmatpush1.msra.mxu0 0.0
    %530 = vmatprep.subr.mxu0 0.0
    %531 = vmatpush1.msra.mxu0 0.0
    %532 = vmatprep.subr.mxu0 0.0
    %533 = vmatpush1.msra.mxu0 0.0
    %534 = vmatprep.subr.mxu0 0.0
    %535 = vmatpush1.msra.mxu0 0.0
    %536 = vmatprep.subr.mxu0 0.0
    %537 = vmatpush1.msra.mxu0 0.0
    %538 = vmatprep.subr.mxu0 0.0
    %539 = vmatpush1.msra.mxu0 0.0
    %540 = vmatprep.subr.mxu0 0.0
    %541 = vmatpush1.msra.mxu0 0.0
    %542 = vmatprep.subr.mxu0 0.0
    %543 = vmatpush1.msra.mxu0 0.0
    %544 = vmatprep.subr.mxu0 0.0
    %545 = vmatpush1.msra.mxu0 0.0
    %546 = vmatprep.subr.mxu0 0.0
    %547 = vmatpush1.msra.mxu0 0.0
    %548 = vmatprep.subr.mxu0 0.0
    %549 = vmatpush1.msra.mxu0 0.0
    %550 = vmatprep.subr.mxu0 0.0
    %551 = vmatpush1.msra.mxu0 0.0
    %552 = vmatprep.subr.mxu0 0.0
    %553 = vmatpush1.msra.mxu0 0.0
    %554 = vmatprep.subr.mxu0 0.0
    %555 = vmatpush1.msra.mxu0 0.0
    %556 = vmatprep.subr.mxu0 0.0
    %557 = vmatpush1.msra.mxu0 0.0
    %558 = vmatprep.subr.mxu0 0.0
    %559 = vmatpush1.msra.mxu0 0.0
    %560 = vmatprep.subr.mxu0 0.0
    %561 = vmatpush1.msra.mxu0 0.0
    %562 = vmatprep.mubr.f32.mxu0 0.0
    %563 = vmatmul.mubr.f32.gmra.mrb[0].mxu0 %v496
    %v564 = vpop.f32.mrb[0].mxu0
    %v565 = vadd.f32 0.0, %v564
    %v566 = vpop.f32.mrb[0].mxu0
    %v567 = vadd.f32 0.0, %v566
    %568 = vdwg.mxu0
    %v571 = vcombine.low %v565, %v567
    %v573 = vunpack.c.l.s4 1983009808
    %v574 = vunpack.c.0.s8 %v573
    %v575 = vlaneseq
    %v576 = vshrl.u32 %v575, 7
    %v577 = vsub.s32 %v574, %v576
    %v578 = vrot.slane %v571, %v577
    %v580 = vadd.f32 %v494, %v578
    %v581 = vmul.f32 %v580, 0.5
    %v582 = vtanh.pop %v581
    %v583 = vadd.f32 %v582, 1.0
    %v584 = vmul.f32 %v583, 0.5
    %586 = vrot.lane.b32.xlu0 %v580, 64
    %v587 = vpop.permute.xlu0 %586
    %v588 = vrot.slane %v587, 2
    %v590 = vtanh.pop %v588
    %v591 = vmul.f32 %v584, %v483
    %v592 = vmul.f32 %v584, %v590
    %594 = vrot.lane.b32.xlu0 %v592, 64
    %v595 = vpop.permute.xlu0 %594
    %v597 = vadd.f32 %v591, %v595
    %v598 = vtanh.pop %v597
    %v600 = vrot.slane %v584, 2
    %603 = vrot.lane.b32.xlu0 %v598, 64
    %v604 = vpop.permute.xlu0 %603
    %v606 = vmul.f32 %v600, %v604
    %s607 = scalar_lea.vmem %s0, 20
    %v608 = vld [vmem:[%s607] sm:$0xf]
    %v610 = vsel %vm38, %v606, 0
    %612 = vmatprep.subr.mxu0 %v22
    %613 = vmatpush1.msra.mxu0 %v21
    %614 = vmatprep.subr.mxu0 %v24
    %615 = vmatpush1.msra.mxu0 %v23
    %616 = vmatprep.subr.mxu0 %v26
    %617 = vmatpush1.msra.mxu0 %v25
    %618 = vmatprep.subr.mxu0 %v28
    %619 = vmatpush1.msra.mxu0 %v27
    %620 = vmatprep.subr.mxu0 %v30
    %621 = vmatpush1.msra.mxu0 %v29
    %622 = vmatprep.subr.mxu0 %v32
    %623 = vmatpush1.msra.mxu0 %v31
    %624 = vmatprep.subr.mxu0 %v34
    %625 = vmatpush1.msra.mxu0 %v33
    %626 = vmatprep.subr.mxu0 %v36
    %627 = vmatpush1.msra.mxu0 %v35
    %628 = vmatprep.subr.mxu0 0.0
    %629 = vmatpush1.msra.mxu0 0.0
    %630 = vmatprep.subr.mxu0 0.0
    %631 = vmatpush1.msra.mxu0 0.0
    %632 = vmatprep.subr.mxu0 0.0
    %633 = vmatpush1.msra.mxu0 0.0
    %634 = vmatprep.subr.mxu0 0.0
    %635 = vmatpush1.msra.mxu0 0.0
    %636 = vmatprep.subr.mxu0 0.0
    %637 = vmatpush1.msra.mxu0 0.0
    %638 = vmatprep.subr.mxu0 0.0
    %639 = vmatpush1.msra.mxu0 0.0
    %640 = vmatprep.subr.mxu0 0.0
    %641 = vmatpush1.msra.mxu0 0.0
    %642 = vmatprep.subr.mxu0 0.0
    %643 = vmatpush1.msra.mxu0 0.0
    %644 = vmatprep.subr.mxu0 0.0
    %645 = vmatpush1.msra.mxu0 0.0
    %646 = vmatprep.subr.mxu0 0.0
    %647 = vmatpush1.msra.mxu0 0.0
    %648 = vmatprep.subr.mxu0 0.0
    %649 = vmatpush1.msra.mxu0 0.0
    %650 = vmatprep.subr.mxu0 0.0
    %651 = vmatpush1.msra.mxu0 0.0
    %652 = vmatprep.subr.mxu0 0.0
    %653 = vmatpush1.msra.mxu0 0.0
    %654 = vmatprep.subr.mxu0 0.0
    %655 = vmatpush1.msra.mxu0 0.0
    %656 = vmatprep.subr.mxu0 0.0
    %657 = vmatpush1.msra.mxu0 0.0
    %658 = vmatprep.subr.mxu0 0.0
    %659 = vmatpush1.msra.mxu0 0.0
    %660 = vmatprep.subr.mxu0 0.0
    %661 = vmatpush1.msra.mxu0 0.0
    %662 = vmatprep.subr.mxu0 0.0
    %663 = vmatpush1.msra.mxu0 0.0
    %664 = vmatprep.subr.mxu0 0.0
    %665 = vmatpush1.msra.mxu0 0.0
    %666 = vmatprep.subr.mxu0 0.0
    %667 = vmatpush1.msra.mxu0 0.0
    %668 = vmatprep.subr.mxu0 0.0
    %669 = vmatpush1.msra.mxu0 0.0
    %670 = vmatprep.subr.mxu0 0.0
    %671 = vmatpush1.msra.mxu0 0.0
    %672 = vmatprep.subr.mxu0 0.0
    %673 = vmatpush1.msra.mxu0 0.0
    %674 = vmatprep.subr.mxu0 0.0
    %675 = vmatpush1.msra.mxu0 0.0
    %676 = vmatprep.mubr.f32.mxu0 0.0
    %677 = vmatmul.mubr.f32.gmra.mrb[0].mxu0 %v610
    %v678 = vpop.f32.mrb[0].mxu0
    %v679 = vadd.f32 0.0, %v678
    %v680 = vpop.f32.mrb[0].mxu0
    %v681 = vadd.f32 0.0, %v680
    %682 = vdwg.mxu0
    %v685 = vcombine.low %v679, %v681
    %v687 = vunpack.c.l.s4 1983009808
    %v688 = vunpack.c.0.s8 %v687
    %v689 = vlaneseq
    %v690 = vshrl.u32 %v689, 7
    %v691 = vsub.s32 %v688, %v690
    %v692 = vrot.slane %v685, %v691
    %v694 = vadd.f32 %v608, %v692
    %v695 = vmul.f32 %v694, 0.5
    %v696 = vtanh.pop %v695
    %v697 = vadd.f32 %v696, 1.0
    %v698 = vmul.f32 %v697, 0.5
    %700 = vrot.lane.b32.xlu0 %v694, 64
    %v701 = vpop.permute.xlu0 %700
    %v702 = vrot.slane %v701, 2
    %v704 = vtanh.pop %v702
    %v705 = vmul.f32 %v698, %v597
    %v706 = vmul.f32 %v698, %v704
    %708 = vrot.lane.b32.xlu0 %v706, 64
    %v709 = vpop.permute.xlu0 %708
    %v711 = vadd.f32 %v705, %v709
    %v712 = vtanh.pop %v711
    %v714 = vrot.slane %v698, 2
    %717 = vrot.lane.b32.xlu0 %v712, 64
    %v718 = vpop.permute.xlu0 %717
    %v720 = vmul.f32 %v714, %v718
    %s721 = scalar_lea.vmem %s0, 24
    %v722 = vld [vmem:[%s721] sm:$0xf]
    %v724 = vsel %vm38, %v720, 0
    %726 = vmatprep.subr.mxu0 %v22
    %727 = vmatpush1.msra.mxu0 %v21
    %728 = vmatprep.subr.mxu0 %v24
    %729 = vmatpush1.msra.mxu0 %v23
    %730 = vmatprep.subr.mxu0 %v26
    %731 = vmatpush1.msra.mxu0 %v25
    %732 = vmatprep.subr.mxu0 %v28
    %733 = vmatpush1.msra.mxu0 %v27
    %734 = vmatprep.subr.mxu0 %v30
    %735 = vmatpush1.msra.mxu0 %v29
    %736 = vmatprep.subr.mxu0 %v32
    %737 = vmatpush1.msra.mxu0 %v31
    %738 = vmatprep.subr.mxu0 %v34
    %739 = vmatpush1.msra.mxu0 %v33
    %740 = vmatprep.subr.mxu0 %v36
    %741 = vmatpush1.msra.mxu0 %v35
    %742 = vmatprep.subr.mxu0 0.0
    %743 = vmatpush1.msra.mxu0 0.0
    %744 = vmatprep.subr.mxu0 0.0
    %745 = vmatpush1.msra.mxu0 0.0
    %746 = vmatprep.subr.mxu0 0.0
    %747 = vmatpush1.msra.mxu0 0.0
    %748 = vmatprep.subr.mxu0 0.0
    %749 = vmatpush1.msra.mxu0 0.0
    %750 = vmatprep.subr.mxu0 0.0
    %751 = vmatpush1.msra.mxu0 0.0
    %752 = vmatprep.subr.mxu0 0.0
    %753 = vmatpush1.msra.mxu0 0.0
    %754 = vmatprep.subr.mxu0 0.0
    %755 = vmatpush1.msra.mxu0 0.0
    %756 = vmatprep.subr.mxu0 0.0
    %757 = vmatpush1.msra.mxu0 0.0
    %758 = vmatprep.subr.mxu0 0.0
    %759 = vmatpush1.msra.mxu0 0.0
    %760 = vmatprep.subr.mxu0 0.0
    %761 = vmatpush1.msra.mxu0 0.0
    %762 = vmatprep.subr.mxu0 0.0
    %763 = vmatpush1.msra.mxu0 0.0
    %764 = vmatprep.subr.mxu0 0.0
    %765 = vmatpush1.msra.mxu0 0.0
    %766 = vmatprep.subr.mxu0 0.0
    %767 = vmatpush1.msra.mxu0 0.0
    %768 = vmatprep.subr.mxu0 0.0
    %769 = vmatpush1.msra.mxu0 0.0
    %770 = vmatprep.subr.mxu0 0.0
    %771 = vmatpush1.msra.mxu0 0.0
    %772 = vmatprep.subr.mxu0 0.0
    %773 = vmatpush1.msra.mxu0 0.0
    %774 = vmatprep.subr.mxu0 0.0
    %775 = vmatpush1.msra.mxu0 0.0
    %776 = vmatprep.subr.mxu0 0.0
    %777 = vmatpush1.msra.mxu0 0.0
    %778 = vmatprep.subr.mxu0 0.0
    %779 = vmatpush1.msra.mxu0 0.0
    %780 = vmatprep.subr.mxu0 0.0
    %781 = vmatpush1.msra.mxu0 0.0
    %782 = vmatprep.subr.mxu0 0.0
    %783 = vmatpush1.msra.mxu0 0.0
    %784 = vmatprep.subr.mxu0 0.0
    %785 = vmatpush1.msra.mxu0 0.0
    %786 = vmatprep.subr.mxu0 0.0
    %787 = vmatpush1.msra.mxu0 0.0
    %788 = vmatprep.subr.mxu0 0.0
    %789 = vmatpush1.msra.mxu0 0.0
    %790 = vmatprep.mubr.f32.mxu0 0.0
    %791 = vmatmul.mubr.f32.gmra.mrb[0].mxu0 %v724
    %v792 = vpop.f32.mrb[0].mxu0
    %v793 = vadd.f32 0.0, %v792
    %v794 = vpop.f32.mrb[0].mxu0
    %v795 = vadd.f32 0.0, %v794
    %796 = vdwg.mxu0
    %v799 = vcombine.low %v793, %v795
    %v801 = vunpack.c.l.s4 1983009808
    %v802 = vunpack.c.0.s8 %v801
    %v803 = vlaneseq
    %v804 = vshrl.u32 %v803, 7
    %v805 = vsub.s32 %v802, %v804
    %v806 = vrot.slane %v799, %v805
    %v808 = vadd.f32 %v722, %v806
    %v809 = vmul.f32 %v808, 0.5
    %v810 = vtanh.pop %v809
    %v811 = vadd.f32 %v810, 1.0
    %v812 = vmul.f32 %v811, 0.5
    %814 = vrot.lane.b32.xlu0 %v808, 64
    %v815 = vpop.permute.xlu0 %814
    %v816 = vrot.slane %v815, 2
    %v818 = vtanh.pop %v816
    %v819 = vmul.f32 %v812, %v711
    %v820 = vmul.f32 %v812, %v818
    %822 = vrot.lane.b32.xlu0 %v820, 64
    %v823 = vpop.permute.xlu0 %822
    %v825 = vadd.f32 %v819, %v823
    %v826 = vtanh.pop %v825
    %v828 = vrot.slane %v812, 2
    %831 = vrot.lane.b32.xlu0 %v826, 64
    %v832 = vpop.permute.xlu0 %831
    %v834 = vmul.f32 %v828, %v832
    %s835 = scalar_lea.vmem %s0, 28
    %v836 = vld [vmem:[%s835] sm:$0xf]
    %v838 = vsel %vm38, %v834, 0
    %840 = vmatprep.subr.mxu0 %v22
    %841 = vmatpush1.msra.mxu0 %v21
    %842 = vmatprep.subr.mxu0 %v24
    %843 = vmatpush1.msra.mxu0 %v23
    %844 = vmatprep.subr.mxu0 %v26
    %845 = vmatpush1.msra.mxu0 %v25
    %846 = vmatprep.subr.mxu0 %v28
    %847 = vmatpush1.msra.mxu0 %v27
    %848 = vmatprep.subr.mxu0 %v30
    %849 = vmatpush1.msra.mxu0 %v29
    %850 = vmatprep.subr.mxu0 %v32
    %851 = vmatpush1.msra.mxu0 %v31
    %852 = vmatprep.subr.mxu0 %v34
    %853 = vmatpush1.msra.mxu0 %v33
    %854 = vmatprep.subr.mxu0 %v36
    %855 = vmatpush1.msra.mxu0 %v35
    %856 = vmatprep.subr.mxu0 0.0
    %857 = vmatpush1.msra.mxu0 0.0
    %858 = vmatprep.subr.mxu0 0.0
    %859 = vmatpush1.msra.mxu0 0.0
    %860 = vmatprep.subr.mxu0 0.0
    %861 = vmatpush1.msra.mxu0 0.0
    %862 = vmatprep.subr.mxu0 0.0
    %863 = vmatpush1.msra.mxu0 0.0
    %864 = vmatprep.subr.mxu0 0.0
    %865 = vmatpush1.msra.mxu0 0.0
    %866 = vmatprep.subr.mxu0 0.0
    %867 = vmatpush1.msra.mxu0 0.0
    %868 = vmatprep.subr.mxu0 0.0
    %869 = vmatpush1.msra.mxu0 0.0
    %870 = vmatprep.subr.mxu0 0.0
    %871 = vmatpush1.msra.mxu0 0.0
    %872 = vmatprep.subr.mxu0 0.0
    %873 = vmatpush1.msra.mxu0 0.0
    %874 = vmatprep.subr.mxu0 0.0
    %875 = vmatpush1.msra.mxu0 0.0
    %876 = vmatprep.subr.mxu0 0.0
    %877 = vmatpush1.msra.mxu0 0.0
    %878 = vmatprep.subr.mxu0 0.0
    %879 = vmatpush1.msra.mxu0 0.0
    %880 = vmatprep.subr.mxu0 0.0
    %881 = vmatpush1.msra.mxu0 0.0
    %882 = vmatprep.subr.mxu0 0.0
    %883 = vmatpush1.msra.mxu0 0.0
    %884 = vmatprep.subr.mxu0 0.0
    %885 = vmatpush1.msra.mxu0 0.0
    %886 = vmatprep.subr.mxu0 0.0
    %887 = vmatpush1.msra.mxu0 0.0
    %888 = vmatprep.subr.mxu0 0.0
    %889 = vmatpush1.msra.mxu0 0.0
    %890 = vmatprep.subr.mxu0 0.0
    %891 = vmatpush1.msra.mxu0 0.0
    %892 = vmatprep.subr.mxu0 0.0
    %893 = vmatpush1.msra.mxu0 0.0
    %894 = vmatprep.subr.mxu0 0.0
    %895 = vmatpush1.msra.mxu0 0.0
    %896 = vmatprep.subr.mxu0 0.0
    %897 = vmatpush1.msra.mxu0 0.0
    %898 = vmatprep.subr.mxu0 0.0
    %899 = vmatpush1.msra.mxu0 0.0
    %900 = vmatprep.subr.mxu0 0.0
    %901 = vmatpush1.msra.mxu0 0.0
    %902 = vmatprep.subr.mxu0 0.0
    %903 = vmatpush1.msra.mxu0 0.0
    %904 = vmatprep.mubr.f32.mxu0 0.0
    %905 = vmatmul.mubr.f32.gmra.mrb[0].mxu0 %v838
    %v906 = vpop.f32.mrb[0].mxu0
    %v907 = vadd.f32 0.0, %v906
    %v908 = vpop.f32.mrb[0].mxu0
    %v909 = vadd.f32 0.0, %v908
    %910 = vdwg.mxu0
    %v913 = vcombine.low %v907, %v909
    %v915 = vunpack.c.l.s4 1983009808
    %v916 = vunpack.c.0.s8 %v915
    %v917 = vlaneseq
    %v918 = vshrl.u32 %v917, 7
    %v919 = vsub.s32 %v916, %v918
    %v920 = vrot.slane %v913, %v919
    %v922 = vadd.f32 %v836, %v920
    %v923 = vmul.f32 %v922, 0.5
    %v924 = vtanh.pop %v923
    %v925 = vadd.f32 %v924, 1.0
    %v926 = vmul.f32 %v925, 0.5
    %928 = vrot.lane.b32.xlu0 %v922, 64
    %v929 = vpop.permute.xlu0 %928
    %v930 = vrot.slane %v929, 2
    %v932 = vtanh.pop %v930
    %v933 = vmul.f32 %v926, %v825
    %v934 = vmul.f32 %v926, %v932
    %936 = vrot.lane.b32.xlu0 %v934, 64
    %v937 = vpop.permute.xlu0 %936
    %v939 = vadd.f32 %v933, %v937
    %v940 = vtanh.pop %v939
    %v942 = vrot.slane %v926, 2
    %945 = vrot.lane.b32.xlu0 %v940, 64
    %v946 = vpop.permute.xlu0 %945
    %v948 = vmul.f32 %v942, %v946
    %950 = vrot.lane.b32.xlu0 %v948, 96
    %v951 = vpop.permute.xlu0 %950
    %v953 = vcombine.low %v948, %v951
    %v955 = vunpack.c.l.s4 1934713408
    %v956 = vunpack.c.0.s8 %v955
    %v957 = vlaneseq
    %v958 = vshrl.u32 %v957, 7
    %v959 = vsub.s32 %v956, %v958
    %v960 = vrot.slane %v953, %v959
    %v961 = vcombine.high %v960, 0.0
    %v964 = vunpack.c.l.s4 1983009808
    %v965 = vunpack.c.0.s8 %v964
    %v966 = vlaneseq
    %v967 = vshrl.u32 %v966, 7
    %v968 = vsub.s32 %v965, %v967
    %v969 = vrot.slane %v961, %v968
    %970 = vrot.lane.b32.xlu0 %v969, 32
    %v971 = vpop.permute.xlu0 %970
    %vm973 = vcmask 261120
    %v974 = vsel %vm973, %v960, %v971
    %v975 = vmul.f32 %v150, %v974
    %vm976 = vcmask 254976
    %v977 = vsel %vm976, %v975, 0.0
    %978 = vadd.xlane.f32.xlu0 %v977
    %v979 = vpop.xlane.xlu0 %978
    %v980 = vmul.f32 %v948, %v974
    %v983 = vunpack.c.l.s4 1983009808
    %v984 = vunpack.c.0.s8 %v983
    %v985 = vlaneseq
    %v986 = vshrl.u32 %v985, 7
    %v987 = vsub.s32 %v984, %v986
    %v988 = vrot.slane %v980, %v987
    %989 = vrot.lane.b32.xlu0 %v988, 96
    %v990 = vpop.permute.xlu0 %989
    %v992 = vsel %vm976, %v990, 0.0
    %993 = vadd.xlane.f32.xlu0 %v992
    %v994 = vpop.xlane.xlu0 %993
    %v995 = vadd.f32 %v979, %v994
    %v996 = vmul.f32 %v264, %v974
    %v997 = vsel %vm976, %v996, 0.0
    %998 = vadd.xlane.f32.xlu0 %v997
    %v999 = vpop.xlane.xlu0 %998
    %v1000 = vmul.f32 %v834, %v974
    %v1003 = vunpack.c.l.s4 1983009808
    %v1004 = vunpack.c.0.s8 %v1003
    %v1005 = vlaneseq
    %v1006 = vshrl.u32 %v1005, 7
    %v1007 = vsub.s32 %v1004, %v1006
    %v1008 = vrot.slane %v1000, %v1007
    %1009 = vrot.lane.b32.xlu0 %v1008, 96
    %v1010 = vpop.permute.xlu0 %1009
    %v1012 = vsel %vm976, %v1010, 0.0
    %1013 = vadd.xlane.f32.xlu0 %v1012
    %v1014 = vpop.xlane.xlu0 %1013
    %v1015 = vadd.f32 %v999, %v1014
    %v1016 = vmul.f32 %v378, %v974
    %v1017 = vsel %vm976, %v1016, 0.0
    %1018 = vadd.xlane.f32.xlu0 %v1017
    %v1019 = vpop.xlane.xlu0 %1018
    %v1020 = vmul.f32 %v720, %v974
    %v1023 = vunpack.c.l.s4 1983009808
    %v1024 = vunpack.c.0.s8 %v1023
    %v1025 = vlaneseq
    %v1026 = vshrl.u32 %v1025, 7
    %v1027 = vsub.s32 %v1024, %v1026
    %v1028 = vrot.slane %v1020, %v1027
    %1029 = vrot.lane.b32.xlu0 %v1028, 96
    %v1030 = vpop.permute.xlu0 %1029
    %v1032 = vsel %vm976, %v1030, 0.0
    %1033 = vadd.xlane.f32.xlu0 %v1032
    %v1034 = vpop.xlane.xlu0 %1033
    %v1035 = vadd.f32 %v1019, %v1034
    %v1036 = vmul.f32 %v492, %v974
    %v1037 = vsel %vm976, %v1036, 0.0
    %1038 = vadd.xlane.f32.xlu0 %v1037
    %v1039 = vpop.xlane.xlu0 %1038
    %v1040 = vmul.f32 %v606, %v974
    %v1043 = vunpack.c.l.s4 1983009808
    %v1044 = vunpack.c.0.s8 %v1043
    %v1045 = vlaneseq
    %v1046 = vshrl.u32 %v1045, 7
    %v1047 = vsub.s32 %v1044, %v1046
    %v1048 = vrot.slane %v1040, %v1047
    %1049 = vrot.lane.b32.xlu0 %v1048, 96
    %v1050 = vpop.permute.xlu0 %1049
    %v1052 = vsel %vm976, %v1050, 0.0
    %1053 = vadd.xlane.f32.xlu0 %v1052
    %v1054 = vpop.xlane.xlu0 %1053
    %v1055 = vadd.f32 %v1039, %v1054
    %v1056 = vsel %vm976, %v1040, 0.0
    %1057 = vadd.xlane.f32.xlu0 %v1056
    %v1058 = vpop.xlane.xlu0 %1057
    %v1061 = vunpack.c.l.s4 1983009808
    %v1062 = vunpack.c.0.s8 %v1061
    %v1063 = vlaneseq
    %v1064 = vshrl.u32 %v1063, 7
    %v1065 = vsub.s32 %v1062, %v1064
    %v1066 = vrot.slane %v1036, %v1065
    %1067 = vrot.lane.b32.xlu0 %v1066, 96
    %v1068 = vpop.permute.xlu0 %1067
    %v1070 = vsel %vm976, %v1068, 0.0
    %1071 = vadd.xlane.f32.xlu0 %v1070
    %v1072 = vpop.xlane.xlu0 %1071
    %v1073 = vadd.f32 %v1058, %v1072
    %v1074 = vsel %vm976, %v1020, 0.0
    %1075 = vadd.xlane.f32.xlu0 %v1074
    %v1076 = vpop.xlane.xlu0 %1075
    %v1079 = vunpack.c.l.s4 1983009808
    %v1080 = vunpack.c.0.s8 %v1079
    %v1081 = vlaneseq
    %v1082 = vshrl.u32 %v1081, 7
    %v1083 = vsub.s32 %v1080, %v1082
    %v1084 = vrot.slane %v1016, %v1083
    %1085 = vrot.lane.b32.xlu0 %v1084, 96
    %v1086 = vpop.permute.xlu0 %1085
    %v1088 = vsel %vm976, %v1086, 0.0
    %1089 = vadd.xlane.f32.xlu0 %v1088
    %v1090 = vpop.xlane.xlu0 %1089
    %v1091 = vadd.f32 %v1076, %v1090
    %v1092 = vsel %vm976, %v1000, 0.0
    %1093 = vadd.xlane.f32.xlu0 %v1092
    %v1094 = vpop.xlane.xlu0 %1093
    %v1097 = vunpack.c.l.s4 1983009808
    %v1098 = vunpack.c.0.s8 %v1097
    %v1099 = vlaneseq
    %v1100 = vshrl.u32 %v1099, 7
    %v1101 = vsub.s32 %v1098, %v1100
    %v1102 = vrot.slane %v996, %v1101
    %1103 = vrot.lane.b32.xlu0 %v1102, 96
    %v1104 = vpop.permute.xlu0 %1103
    %v1106 = vsel %vm976, %v1104, 0.0
    %1107 = vadd.xlane.f32.xlu0 %v1106
    %v1108 = vpop.xlane.xlu0 %1107
    %v1109 = vadd.f32 %v1094, %v1108
    %v1110 = vsel %vm976, %v980, 0.0
    %1111 = vadd.xlane.f32.xlu0 %v1110
    %v1112 = vpop.xlane.xlu0 %1111
    %v1115 = vunpack.c.l.s4 1983009808
    %v1116 = vunpack.c.0.s8 %v1115
    %v1117 = vlaneseq
    %v1118 = vshrl.u32 %v1117, 7
    %v1119 = vsub.s32 %v1116, %v1118
    %v1120 = vrot.slane %v975, %v1119
    %1121 = vrot.lane.b32.xlu0 %v1120, 96
    %v1122 = vpop.permute.xlu0 %1121
    %v1124 = vsel %vm976, %v1122, 0.0
    %1125 = vadd.xlane.f32.xlu0 %v1124
    %v1126 = vpop.xlane.xlu0 %1125
    %v1127 = vadd.f32 %v1112, %v1126
    %vm1128 = vcmask 7168
    %v1129 = vsel %vm1128, %v995, %v1015
    %vm1130 = vcmask 15360
    %v1131 = vsel %vm1130, %v1129, %v1035
    %vm1132 = vcmask 23552
    %v1133 = vsel %vm1132, %v1131, %v1055
    %vm1134 = vcmask 31744
    %v1135 = vsel %vm1134, %v1133, %v1073
    %vm1136 = vcmask 39936
    %v1137 = vsel %vm1136, %v1135, %v1091
    %vm1138 = vcmask 48128
    %v1139 = vsel %vm1138, %v1137, %v1109
    %vm1140 = vcmask 56320
    %v1141 = vsel %vm1140, %v1139, %v1127
    %vm1142 = vcmask 58368
    %v1143 = vsel %vm1142, %v1141, -inf
    %1144 = vmax.xlane.f32.xlu0 %v1143
    %v1145 = vpop.xlane.xlu0 %1144
    %v1146 = vsub.f32 %v1141, %v1145
    %v1147 = vmul.f32 %v1146, 1.442695
    %v1148 = vpow.pop %v1147
    %v1149 = vsel %vm1142, %v1148, 0.0
    %1150 = vadd.xlane.f32.xlu0 %v1149
    %v1151 = vpop.xlane.xlu0 %1150
    %v1152 = vrcp.pop %v1151
    %v1153 = vmul.f32 %v1148, %v1152
    %1155 = vset.pattern.permute.xlu0 0
    %1156 = vperm.xlu0 %1155, %v1153
    %v1157 = vpop.permute.xlu0 %1156
    %v1159 = vmul.f32 %v1157, %v150
    %v1160 = vadd.f32 %v1159, 0.0
    %1161 = vset.pattern.permute.xlu0 7
    %1162 = vperm.xlu0 %1161, %v1153
    %v1163 = vpop.permute.xlu0 %1162
    %v1166 = vunpack.c.l.s4 1983009808
    %v1167 = vunpack.c.0.s8 %v1166
    %v1168 = vlaneseq
    %v1169 = vshrl.u32 %v1168, 7
    %v1170 = vsub.s32 %v1167, %v1169
    %v1171 = vrot.slane %v150, %v1170
    %1172 = vrot.lane.b32.xlu0 %v1171, 96
    %v1173 = vpop.permute.xlu0 %1172
    %v1175 = vmul.f32 %v1163, %v1173
    %v1176 = vadd.f32 %v1175, 0.0
    %1177 = vset.pattern.permute.xlu0 1
    %1178 = vperm.xlu0 %1177, %v1153
    %v1179 = vpop.permute.xlu0 %1178
    %v1181 = vmul.f32 %v1179, %v264
    %v1182 = vadd.f32 %v1160, %v1181
    %1183 = vset.pattern.permute.xlu0 6
    %1184 = vperm.xlu0 %1183, %v1153
    %v1185 = vpop.permute.xlu0 %1184
    %v1188 = vunpack.c.l.s4 1983009808
    %v1189 = vunpack.c.0.s8 %v1188
    %v1190 = vlaneseq
    %v1191 = vshrl.u32 %v1190, 7
    %v1192 = vsub.s32 %v1189, %v1191
    %v1193 = vrot.slane %v264, %v1192
    %1194 = vrot.lane.b32.xlu0 %v1193, 96
    %v1195 = vpop.permute.xlu0 %1194
    %v1197 = vmul.f32 %v1185, %v1195
    %v1198 = vadd.f32 %v1176, %v1197
    %1199 = vset.pattern.permute.xlu0 2
    %1200 = vperm.xlu0 %1199, %v1153
    %v1201 = vpop.permute.xlu0 %1200
    %v1203 = vmul.f32 %v1201, %v378
    %v1204 = vadd.f32 %v1182, %v1203
    %1205 = vset.pattern.permute.xlu0 5
    %1206 = vperm.xlu0 %1205, %v1153
    %v1207 = vpop.permute.xlu0 %1206
    %v1210 = vunpack.c.l.s4 1983009808
    %v1211 = vunpack.c.0.s8 %v1210
    %v1212 = vlaneseq
    %v1213 = vshrl.u32 %v1212, 7
    %v1214 = vsub.s32 %v1211, %v1213
    %v1215 = vrot.slane %v378, %v1214
    %1216 = vrot.lane.b32.xlu0 %v1215, 96
    %v1217 = vpop.permute.xlu0 %1216
    %v1219 = vmul.f32 %v1207, %v1217
    %v1220 = vadd.f32 %v1198, %v1219
    %1221 = vset.pattern.permute.xlu0 3
    %1222 = vperm.xlu0 %1221, %v1153
    %v1223 = vpop.permute.xlu0 %1222
    %v1225 = vmul.f32 %v1223, %v492
    %v1226 = vadd.f32 %v1204, %v1225
    %1227 = vset.pattern.permute.xlu0 4
    %1228 = vperm.xlu0 %1227, %v1153
    %v1229 = vpop.permute.xlu0 %1228
    %v1232 = vunpack.c.l.s4 1983009808
    %v1233 = vunpack.c.0.s8 %v1232
    %v1234 = vlaneseq
    %v1235 = vshrl.u32 %v1234, 7
    %v1236 = vsub.s32 %v1233, %v1235
    %v1237 = vrot.slane %v492, %v1236
    %1238 = vrot.lane.b32.xlu0 %v1237, 96
    %v1239 = vpop.permute.xlu0 %1238
    %v1241 = vmul.f32 %v1229, %v1239
    %v1242 = vadd.f32 %v1220, %v1241
    %v1243 = vmul.f32 %v1229, %v606
    %v1244 = vadd.f32 %v1226, %v1243
    %v1246 = vunpack.c.l.s4 1983009808
    %v1247 = vunpack.c.0.s8 %v1246
    %v1248 = vlaneseq
    %v1249 = vshrl.u32 %v1248, 7
    %v1250 = vsub.s32 %v1247, %v1249
    %v1251 = vrot.slane %v606, %v1250
    %1252 = vrot.lane.b32.xlu0 %v1251, 96
    %v1253 = vpop.permute.xlu0 %1252
    %v1255 = vmul.f32 %v1223, %v1253
    %v1256 = vadd.f32 %v1242, %v1255
    %v1257 = vmul.f32 %v1207, %v720
    %v1258 = vadd.f32 %v1244, %v1257
    %v1260 = vunpack.c.l.s4 1983009808
    %v1261 = vunpack.c.0.s8 %v1260
    %v1262 = vlaneseq
    %v1263 = vshrl.u32 %v1262, 7
    %v1264 = vsub.s32 %v1261, %v1263
    %v1265 = vrot.slane %v720, %v1264
    %1266 = vrot.lane.b32.xlu0 %v1265, 96
    %v1267 = vpop.permute.xlu0 %1266
    %v1269 = vmul.f32 %v1201, %v1267
    %v1270 = vadd.f32 %v1256, %v1269
    %v1271 = vmul.f32 %v1185, %v834
    %v1272 = vadd.f32 %v1258, %v1271
    %v1274 = vunpack.c.l.s4 1983009808
    %v1275 = vunpack.c.0.s8 %v1274
    %v1276 = vlaneseq
    %v1277 = vshrl.u32 %v1276, 7
    %v1278 = vsub.s32 %v1275, %v1277
    %v1279 = vrot.slane %v834, %v1278
    %1280 = vrot.lane.b32.xlu0 %v1279, 96
    %v1281 = vpop.permute.xlu0 %1280
    %v1283 = vmul.f32 %v1179, %v1281
    %v1284 = vadd.f32 %v1270, %v1283
    %v1285 = vmul.f32 %v1163, %v948
    %v1286 = vadd.f32 %v1272, %v1285
    %v1288 = vunpack.c.l.s4 1983009808
    %v1289 = vunpack.c.0.s8 %v1288
    %v1290 = vlaneseq
    %v1291 = vshrl.u32 %v1290, 7
    %v1292 = vsub.s32 %v1289, %v1291
    %v1293 = vrot.slane %v948, %v1292
    %1294 = vrot.lane.b32.xlu0 %v1293, 96
    %v1295 = vpop.permute.xlu0 %1294
    %v1297 = vmul.f32 %v1157, %v1295
    %v1298 = vadd.f32 %v1284, %v1297
    %1300 = vrot.lane.b32.xlu0 %v1298, 32
    %v1301 = vpop.permute.xlu0 %1300
    %v1303 = vsel %vm973, %v1286, %v1301
    %v1304 = vld [vmem:[%s2] sm:$0xff]
    %v1305 = vld [vmem:[%s2 + $0x8] sm:$0xff]
    %v1306 = vld [vmem:[%s2 + $0x10] sm:$0xff]
    %v1307 = vld [vmem:[%s2 + $0x18] sm:$0xff]
    %v1308 = vld [vmem:[%s2 + $0x20] sm:$0xff]
    %v1309 = vld [vmem:[%s2 + $0x28] sm:$0xff]
    %v1310 = vld [vmem:[%s2 + $0x30] sm:$0xff]
    %v1311 = vld [vmem:[%s2 + $0x38] sm:$0xff]
    %v1312 = vld [vmem:[%s3] sm:$0x1]
    %v1314 = vlaneseq
    %v1315 = vshrl.u32 %v1314, 7
    %v1316 = vsub.s32 0, %v1315
    %v1317 = vrot.slane %v1312, %v1316
    %v1320 = vsel %vm38, %v1303, 0
    %1322 = vmatprep.subr.mxu0 0.0
    %1323 = vmatpush1.msra.mxu0 %v1304
    %1324 = vmatprep.subr.mxu0 0.0
    %1325 = vmatpush1.msra.mxu0 %v1305
    %1326 = vmatprep.subr.mxu0 0.0
    %1327 = vmatpush1.msra.mxu0 %v1306
    %1328 = vmatprep.subr.mxu0 0.0
    %1329 = vmatpush1.msra.mxu0 %v1307
    %1330 = vmatprep.subr.mxu0 0.0
    %1331 = vmatpush1.msra.mxu0 %v1308
    %1332 = vmatprep.subr.mxu0 0.0
    %1333 = vmatpush1.msra.mxu0 %v1309
    %1334 = vmatprep.subr.mxu0 0.0
    %1335 = vmatpush1.msra.mxu0 %v1310
    %1336 = vmatprep.subr.mxu0 0.0
    %1337 = vmatpush1.msra.mxu0 %v1311
    %1338 = vmatprep.subr.mxu0 0.0
    %1339 = vmatpush1.msra.mxu0 0.0
    %1340 = vmatprep.subr.mxu0 0.0
    %1341 = vmatpush1.msra.mxu0 0.0
    %1342 = vmatprep.subr.mxu0 0.0
    %1343 = vmatpush1.msra.mxu0 0.0
    %1344 = vmatprep.subr.mxu0 0.0
    %1345 = vmatpush1.msra.mxu0 0.0
    %1346 = vmatprep.subr.mxu0 0.0
    %1347 = vmatpush1.msra.mxu0 0.0
    %1348 = vmatprep.subr.mxu0 0.0
    %1349 = vmatpush1.msra.mxu0 0.0
    %1350 = vmatprep.subr.mxu0 0.0
    %1351 = vmatpush1.msra.mxu0 0.0
    %1352 = vmatprep.subr.mxu0 0.0
    %1353 = vmatpush1.msra.mxu0 0.0
    %1354 = vmatprep.subr.mxu0 0.0
    %1355 = vmatpush1.msra.mxu0 0.0
    %1356 = vmatprep.subr.mxu0 0.0
    %1357 = vmatpush1.msra.mxu0 0.0
    %1358 = vmatprep.subr.mxu0 0.0
    %1359 = vmatpush1.msra.mxu0 0.0
    %1360 = vmatprep.subr.mxu0 0.0
    %1361 = vmatpush1.msra.mxu0 0.0
    %1362 = vmatprep.subr.mxu0 0.0
    %1363 = vmatpush1.msra.mxu0 0.0
    %1364 = vmatprep.subr.mxu0 0.0
    %1365 = vmatpush1.msra.mxu0 0.0
    %1366 = vmatprep.subr.mxu0 0.0
    %1367 = vmatpush1.msra.mxu0 0.0
    %1368 = vmatprep.subr.mxu0 0.0
    %1369 = vmatpush1.msra.mxu0 0.0
    %1370 = vmatprep.subr.mxu0 0.0
    %1371 = vmatpush1.msra.mxu0 0.0
    %1372 = vmatprep.subr.mxu0 0.0
    %1373 = vmatpush1.msra.mxu0 0.0
    %1374 = vmatprep.subr.mxu0 0.0
    %1375 = vmatpush1.msra.mxu0 0.0
    %1376 = vmatprep.subr.mxu0 0.0
    %1377 = vmatpush1.msra.mxu0 0.0
    %1378 = vmatprep.subr.mxu0 0.0
    %1379 = vmatpush1.msra.mxu0 0.0
    %1380 = vmatprep.subr.mxu0 0.0
    %1381 = vmatpush1.msra.mxu0 0.0
    %1382 = vmatprep.subr.mxu0 0.0
    %1383 = vmatpush1.msra.mxu0 0.0
    %1384 = vmatprep.subr.mxu0 0.0
    %1385 = vmatpush1.msra.mxu0 0.0
    %1386 = vmatprep.mubr.f32.mxu0 0.0
    %1387 = vmatmul.mubr.f32.gmra.mrb[0].mxu0 %v1320
    %v1388 = vpop.f32.mrb[0].mxu0
    %v1389 = vadd.f32 %v1317, %v1388
    %v1390 = vpop.f32.mrb[0].mxu0
    %1391 = vdwg.mxu0
    %vm1392 = vcmask 9216
    %1393 = vst.msk [vmem:[#allocation2] sm:$0x3] %vm1392, %v1389
    %1394 = vst.msk [vmem:[#allocation4] sm:$0x3] %vm1142, %v1153
    // Predicated region
    $region18: #{bilstm_attention_forward.1} parent=1 // pred_check
      _
    $region19: #{bilstm_attention_forward.1} parent=1 // pred_check_branch
      %1396 = sbr.rel (0) target = $region21
    $region20: #{bilstm_attention_forward.1} parent=1 // pred_region
      %s1398 = ssub.s32 32, 32
      %1399 = vsyncadd [#allocation3], %s1398
      %s1401 = sshll.u32 [#allocation2], 4
      %s1402 = int_to_ptr.vmem [resolvable:$true] %s1401
      %1404 = dma.vmem_to_hbm [thread:$0]  %s1402, 32, %s4, [#allocation3]
    $region21: #{bilstm_attention_forward.1} parent=1 // pred_fallthru
      _
    // Predicated region
    $region22: #{bilstm_attention_forward.1} parent=1 // pred_check
      _
    $region23: #{bilstm_attention_forward.1} parent=1 // pred_check_branch
      %1406 = sbr.rel (0) target = $region25
    $region24: #{bilstm_attention_forward.1} parent=1 // pred_region
      %s1408 = ssub.s32 32, 32
      %1409 = vsyncadd [#allocation5], %s1408
      %s1411 = sshll.u32 [#allocation4], 4
      %s1412 = int_to_ptr.vmem [resolvable:$true] %s1411
      %1414 = dma.vmem_to_hbm [thread:$0]  %s1412, 32, %s5, [#allocation5]
    $region25: #{bilstm_attention_forward.1} parent=1 // pred_fallthru
      _
    // Predicated region
    $region26: #{bilstm_attention_forward.1} parent=1 // pred_check
      _
    $region27: #{bilstm_attention_forward.1} parent=1 // pred_check_branch
      %1416 = sbr.rel (0) target = $region29
    $region28: #{bilstm_attention_forward.1} parent=1 // pred_region
      %1417 = dma.done [#allocation3], 32
    $region29: #{bilstm_attention_forward.1} parent=1 // pred_fallthru
      _
    // Predicated region
    $region30: #{bilstm_attention_forward.1} parent=1 // pred_check
      _
    $region31: #{bilstm_attention_forward.1} parent=1 // pred_check_branch
      %1419 = sbr.rel (0) target = $region33
    $region32: #{bilstm_attention_forward.1} parent=1 // pred_region
      %1420 = dma.done [#allocation5], 32
    $region33: #{bilstm_attention_forward.1} parent=1 // pred_fallthru
      _
    %1421 = vsyncpa [#allocation3], 1
    %1422 = vsyncpa [#allocation5], 1

</llo_original>
